<compile_context>
chip_gen: v6e
topology: v6e:2x2x1
jax: 0.10.0
libtpu: 0.0.40
codegen_flags: <defaults>
</compile_context>

<pallas_src>
import jax
import jax.numpy as jnp
from jax.experimental import pallas as pl
from jax.experimental.pallas import tpu as pltpu

EPS = 1e-5


# ---------------------------------------------------------------------------
# host-side weight folding
# ---------------------------------------------------------------------------
def _fold_conv3x3_weights(w, W, dtype=jnp.bfloat16):
    """(3, 3, C, Cout) -> (3*W*C, W*Cout) block-banded matrix.

    Row index = ky*(W*C) + w_in*C + c  (channel-fastest lane layout),
    Col index = w_out*Cout + co,
    Entry     = w[ky, kx, c, co] iff w_in == w_out + kx - 1 (width zero-padding is
                encoded by simply omitting out-of-range taps).
    """
    kh, kw, C, Cout = w.shape
    assert kh == 3 and kw == 3
    sel = jnp.stack([jnp.eye(W, k=1 - kx, dtype=w.dtype) for kx in range(kw)])
    band = jnp.einsum('xio,yxck->yicok', sel, w)      # (ky, w_in, c, w_out, co)
    return band.reshape(kh * W * C, W * Cout).astype(dtype)


# ---------------------------------------------------------------------------
# in-kernel helpers
# ---------------------------------------------------------------------------
def _zero_halo_rows(xcat_ref):
    """Zero the two pad positions of the im2row scratch (band 0 / row 0 and
    band 2 / row H-1).  They are never overwritten by the fills below, so one
    zeroing per grid step covers every chunk and both convs of pass 2."""
    cn, H, WC3 = xcat_ref.shape
    WC = WC3 // 3
    z = jnp.zeros((cn, 1, WC), xcat_ref.dtype)
    xcat_ref[:, 0:1, 0:WC] = z
    xcat_ref[:, H - 1:H, 2 * WC:3 * WC] = z


def _im2row_fill(xcat_ref, xb):
    """Fill the interior of the im2row scratch with three shifted row views of
    xb (bf16, (cn, H, WC)).  Band dy holds input row h + dy - 1."""
    cn, H, WC3 = xcat_ref.shape
    WC = WC3 // 3
    xcat_ref[:, 1:H, 0:WC] = xb[:, 0:H - 1, :]
    xcat_ref[:, :, WC:2 * WC] = xb
    xcat_ref[:, 0:H - 1, 2 * WC:3 * WC] = xb[:, 1:H, :]


def _conv_from_scratch(xcat_ref, w_ref):
    """One MXU dot: (cn*H, 3*WC) bf16 x (3*WC, WC) bf16 -> (cn*H, WC) f32."""
    cn, H, WC3 = xcat_ref.shape
    patch = xcat_ref[...].reshape(cn * H, WC3)
    return jnp.dot(patch, w_ref[...], preferred_element_type=jnp.float32)


# ---------------------------------------------------------------------------
# kernels (grid over batch tiles)
# ---------------------------------------------------------------------------
def _conv1_stats_kernel(x_ref, w1_ref, stats_ref, xcat_ref):
    """Pass 1: per-tile [sum, sum-of-squares] of conv1(x).  No y1 store."""
    TN, H, WC = x_ref.shape
    cn = xcat_ref.shape[0]
    nchunks = TN // cn

    _zero_halo_rows(xcat_ref)
    s1 = jnp.zeros((1, WC), jnp.float32)
    s2 = jnp.zeros((1, WC), jnp.float32)
    for c in range(nchunks):                      # trace-time unrolled; small count
        xb = x_ref[c * cn:(c + 1) * cn, :, :].astype(jnp.bfloat16)
        _im2row_fill(xcat_ref, xb)
        acc = _conv_from_scratch(xcat_ref, w1_ref)          # (cn*H, WC) f32
        s1 = s1 + jnp.sum(acc, axis=0, keepdims=True)
        s2 = s2 + jnp.sum(acc * acc, axis=0, keepdims=True)
    stats_ref[...] = jnp.concatenate([s1, s2], axis=0).reshape(1, 2, WC)


def _fused_block_kernel(x_ref, sc1_ref, sh1_ref, w1_ref, w2_ref,
                        y2_ref, stats_ref, xcat_ref):
    """Pass 2: recompute conv1(x), BN1 + ReLU, conv2; store y2 (bf16) + BN2 stats."""
    TN, H, WC = x_ref.shape
    cn = xcat_ref.shape[0]
    nchunks = TN // cn

    _zero_halo_rows(xcat_ref)
    sc1 = sc1_ref[...]                            # (1, WC) global BN1 scale
    sh1 = sh1_ref[...]
    s1 = jnp.zeros((1, WC), jnp.float32)
    s2 = jnp.zeros((1, WC), jnp.float32)
    for c in range(nchunks):
        xb = x_ref[c * cn:(c + 1) * cn, :, :].astype(jnp.bfloat16)
        _im2row_fill(xcat_ref, xb)
        acc1 = _conv_from_scratch(xcat_ref, w1_ref)         # conv1, f32
        y = jnp.maximum(acc1 * sc1 + sh1, 0.0)              # BN1 + ReLU
        yb = y.astype(jnp.bfloat16).reshape(cn, H, WC)
        _im2row_fill(xcat_ref, yb)                          # reuse scratch for conv2
        acc2 = _conv_from_scratch(xcat_ref, w2_ref)         # conv2, f32
        s1 = s1 + jnp.sum(acc2, axis=0, keepdims=True)
        s2 = s2 + jnp.sum(acc2 * acc2, axis=0, keepdims=True)
        y2_ref[c * cn:(c + 1) * cn, :, :] = acc2.reshape(cn, H, WC).astype(y2_ref.dtype)
    stats_ref[...] = jnp.concatenate([s1, s2], axis=0).reshape(1, 2, WC)


def _bn_residual_relu_kernel(y2_ref, sc2_ref, sh2_ref, x_ref, out_ref):
    """Pass 3: out = relu(BN2(y2) + identity).  Fully lane-dense elementwise."""
    y2 = y2_ref[...].astype(jnp.float32)
    out = y2 * sc2_ref[...][None] + sh2_ref[...][None] + x_ref[...]
    out_ref[...] = jnp.maximum(out, 0.0).astype(out_ref.dtype)


# ---------------------------------------------------------------------------
# tiling / VMEM sizing helpers
# ---------------------------------------------------------------------------
def _vmem_limit_bytes():
    # ~3/4 of physical VMEM, capped at 100 MiB: ~96-100 MiB on v5e/v6e (128 MiB
    # physical), ~48 MiB on v7x (64 MiB physical).  Falls back to a safe 48 MiB.
    try:
        phys = int(pltpu.get_tpu_info().vmem_capacity_bytes)
    except Exception:
        phys = 64 * 1024 * 1024
    return max(32 * 1024 * 1024, min(phys * 3 // 4, 100 * 1024 * 1024))


def _pick_tiles(N, H, WC):
    """tile_n: batch images per grid step; cn: images per in-kernel chunk."""
    # Per grid step, pipelined activation footprint ~= (x f32 + y2 bf16 + out f32)
    # x 2 buffers.  Budget ~8 MiB of activations per step (safe on all generations
    # once weights + scratch + stats are added under the vmem limit).
    per_img = H * WC * (4 + 2 + 4) * 2
    budget = 8 << 20
    tn = 1
    for t in range(1, N + 1):
        if N % t:
            continue
        if t * per_img > budget:
            continue
        if N // t < 2 and N > 1:      # keep >= 2 grid steps (megacore + pipelining)
            continue
        tn = t
    cn = 1
    for c in range(1, tn + 1):
        if tn % c == 0 and c * H <= 256:   # bound f32 accumulator to ~32 vregs
            cn = c
    return tn, cn


# ---------------------------------------------------------------------------
# wrapper
# ---------------------------------------------------------------------------
@jax.jit
def basic_block1(x, w1, g1, b1, w2, g2, b2):
    """x: (N, H, W, C) NHWC float32.  Returns (N, H, W, C) float32."""
    N, H, W, C = x.shape
    Cout = w1.shape[-1]
    assert w1.shape == (3, 3, C, Cout) and w2.shape == (3, 3, Cout, Cout)
    assert C == Cout, "downsample=None requires in_channels == out_channels"
    WC = W * Cout
    # Lane-dense / sublane-aligned layout guards (relayout-free reshapes).
    assert WC % 128 == 0, "W*C must be a multiple of 128 for lane-dense layout"
    assert H % 8 == 0, "H must be a multiple of 8 sublanes"

    tile_n, cn = _pick_tiles(N, H, WC)
    tiles = N // tile_n
    total = N * H * W

    w1b = _fold_conv3x3_weights(w1, W)             # (3*W*C, W*Cout) bf16
    w2b = _fold_conv3x3_weights(w2, W)
    x2d = x.reshape(N, H, WC)                      # lane-dense view (free reshape)

    cparams = pltpu.CompilerParams(
        dimension_semantics=("parallel",),         # megacore sharding on v7x
        vmem_limit_bytes=_vmem_limit_bytes(),
    )
    act_spec = pl.BlockSpec((tile_n, H, WC), lambda i: (i, 0, 0))
    vec_spec = pl.BlockSpec((1, WC), lambda i: (0, 0))
    wgt_spec = pl.BlockSpec((3 * WC, WC), lambda i: (0, 0))
    st_spec = pl.BlockSpec((1, 2, WC), lambda i: (i, 0, 0))
    im2row_scratch = [pltpu.VMEM((cn, H, 3 * WC), jnp.bfloat16)]

    conv_flops = 2 * N * H * (3 * WC) * WC
    cost1 = pl.CostEstimate(flops=conv_flops, transcendentals=0,
                            bytes_accessed=4 * total * C + 2 * 3 * WC * WC)
    cost2 = pl.CostEstimate(flops=2 * conv_flops, transcendentals=0,
                            bytes_accessed=(4 + 2) * total * C + 2 * 2 * 3 * WC * WC)

    def bn_scale_shift(st, g, b):
        # Global training-mode BatchNorm statistics from per-tile partial sums.
        # TODO(synk): one-pass E[x^2]-E[x]^2 (clamped) is fine here but is fragile
        # when |mean| >> std; switch to shifted sums for training-grade fidelity.
        s = st[:, 0, :].reshape(tiles, W, Cout).sum(axis=(0, 1))
        ss = st[:, 1, :].reshape(tiles, W, Cout).sum(axis=(0, 1))
        mean = s / total
        var = jnp.maximum(ss / total - mean * mean, 0.0)
        scale = g * jax.lax.rsqrt(var + EPS)
        shift = b - mean * scale
        # tile per-channel vectors across W to match the lane-dense (W*C) layout
        return (jnp.tile(scale, W).reshape(1, WC),
                jnp.tile(shift, W).reshape(1, WC))

    # ---- pass 1: BN1 partial statistics of conv1(x) (no y1 store) -----------
    st1 = pl.pallas_call(
        _conv1_stats_kernel,
        grid=(tiles,),
        in_specs=[act_spec, wgt_spec],
        out_specs=st_spec,
        out_shape=jax.ShapeDtypeStruct((tiles, 2, WC), jnp.float32),
        scratch_shapes=im2row_scratch,
        compiler_params=cparams,
        cost_estimate=cost1,
    )(x2d, w1b)

    sc1, sh1 = bn_scale_shift(st1, g1, b1)

    # ---- pass 2: recompute conv1 + BN1 + ReLU + conv2 -> y2 (bf16) + BN2 stats
    y2, st2 = pl.pallas_call(
        _fused_block_kernel,
        grid=(tiles,),
        in_specs=[act_spec, vec_spec, vec_spec, wgt_spec, wgt_spec],
        out_specs=[act_spec, st_spec],
        out_shape=[jax.ShapeDtypeStruct((N, H, WC), jnp.bfloat16),
                   jax.ShapeDtypeStruct((tiles, 2, WC), jnp.float32)],
        scratch_shapes=im2row_scratch,
        compiler_params=cparams,
        cost_estimate=cost2,
    )(x2d, sc1, sh1, w1b, w2b)

    sc2, sh2 = bn_scale_shift(st2, g2, b2)

    # ---- pass 3: BN2 + residual add + ReLU ----------------------------------
    out = pl.pallas_call(
        _bn_residual_relu_kernel,
        grid=(tiles,),
        in_specs=[act_spec, vec_spec, vec_spec, act_spec],
        out_specs=act_spec,
        out_shape=jax.ShapeDtypeStruct((N, H, WC), x.dtype),
        compiler_params=cparams,
    )(y2, sc2, sh2, x2d)

    return out.reshape(N, H, W, Cout)


# ---------------------------------------------------------------------------
# pure-JAX reference (mirrors the PyTorch forward, training-mode BN, f32)
# ---------------------------------------------------------------------------
def basic_block1_reference(x, w1, g1, b1, w2, g2, b2):
    def conv(a, w):
        return jax.lax.conv_general_dilated(
            a, w, window_strides=(1, 1), padding=((1, 1), (1, 1)),
            dimension_numbers=('NHWC', 'HWIO', 'NHWC'))

    def bn(a, g, b):
        m = a.mean(axis=(0, 1, 2))
        v = ((a - m) ** 2).mean(axis=(0, 1, 2))
        return (a - m) / jnp.sqrt(v + EPS) * g + b

    out = jax.nn.relu(bn(conv(x, w1), g1, b1))
    out = bn(conv(out, w2), g2, b2)
    return jax.nn.relu(out + x)


if __name__ == "__main__":
    # Small shapes consistent with the module (in_channels == out_channels,
    # downsample=None).  W*C = 128 -> naturally lane-dense; N=8 gives 2 grid steps
    # with tile_n=4 so the pipeline / megacore path is actually exercised.
    N, H, W, C = 8, 16, 16, 8
    Cout = C

    key = jax.random.PRNGKey(0)
    kx, kw1, kw2 = jax.random.split(key, 3)

    x = jax.random.normal(kx, (N, H, W, C), jnp.float32)
    w1 = jax.random.normal(kw1, (3, 3, C, Cout), jnp.float32) * (2.0 / (9 * C)) ** 0.5
    w2 = jax.random.normal(kw2, (3, 3, Cout, Cout), jnp.float32) * (2.0 / (9 * Cout)) ** 0.5
    g1 = 1.0 + 0.05 * jnp.arange(Cout, dtype=jnp.float32)
    b1 = 0.02 * jnp.arange(Cout, dtype=jnp.float32)
    g2 = 1.0 - 0.03 * jnp.arange(Cout, dtype=jnp.float32)
    b2 = -0.01 * jnp.arange(Cout, dtype=jnp.float32)

    out = jax.block_until_ready(basic_block1(x, w1, g1, b1, w2, g2, b2))
    ref = jax.block_until_ready(basic_block1_reference(x, w1, g1, b1, w2, g2, b2))

    assert out.shape == (N, H, W, Cout)
    # tolerance accounts for bf16 MXU operands / bf16 y2 intermediate vs f32 reference
    max_err = float(jnp.max(jnp.abs(out - ref)))
    assert jnp.allclose(out, ref, rtol=5e-2, atol=5e-2), max_err
    print("KERNEL_OK")
</pallas_src>

<mosaic_0001>
module attributes {stable_mosaic.version = 11 : i64} {
  func.func @_conv1_stats_kernel(%arg0: i32, %arg1: memref<4x16x128xf32, #tpu.memory_space<vmem>>, %arg2: memref<384x128xbf16, #tpu.memory_space<vmem>>, %arg3: memref<1x2x128xf32, #tpu.memory_space<vmem>>, %arg4: memref<4x16x384xbf16, #tpu.memory_space<vmem>>) attributes {dimension_semantics = [#tpu.dimension_semantics<parallel>], iteration_bounds = array<i64: 2>, scalar_prefetch = 0 : i64, scratch_operands = 1 : i64, tpu.core_type = #tpu.core_type<tc>, window_params = [{transform_indices = @transform_0, window_bounds = array<i64: 4, 16, 128>}, {pipeline_mode = #tpu.pipeline_mode<synchronous>, transform_indices = @transform_1, window_bounds = array<i64: 384, 128>}, {transform_indices = @transform_2, window_bounds = array<i64: 1, 2, 128>}]} {
    %cst = arith.constant 0.000000e+00 : bf16
    %0 = vector.broadcast %cst : bf16 to vector<4x1x128xbf16>
    %c0 = arith.constant 0 : index
    %c0_0 = arith.constant 0 : index
    %c0_1 = arith.constant 0 : index
    %1 = vector.load %arg4[%c0, %c0_0, %c0_1] : memref<4x16x384xbf16, #tpu.memory_space<vmem>>, vector<4x1x128xbf16>
    tpu.vector_store %arg4[%c0, %c0_0, %c0_1], %0 {strides = array<i32>} : memref<4x16x384xbf16, #tpu.memory_space<vmem>>, vector<4x1x128xbf16>,
    %c0_2 = arith.constant 0 : index
    %c15 = arith.constant 15 : index
    %c256 = arith.constant 256 : index
    %2 = vector.load %arg4[%c0_2, %c15, %c256] : memref<4x16x384xbf16, #tpu.memory_space<vmem>>, vector<4x1x128xbf16>
    tpu.vector_store %arg4[%c0_2, %c15, %c256], %0 {strides = array<i32>} : memref<4x16x384xbf16, #tpu.memory_space<vmem>>, vector<4x1x128xbf16>,
    %cst_3 = arith.constant 0.000000e+00 : f32
    %3 = vector.broadcast %cst_3 : f32 to vector<1x128xf32>
    %cst_4 = arith.constant 0.000000e+00 : f32
    %4 = vector.broadcast %cst_4 : f32 to vector<1x128xf32>
    %c0_5 = arith.constant 0 : index
    %c0_6 = arith.constant 0 : index
    %c0_7 = arith.constant 0 : index
    %5 = vector.load %arg1[%c0_5, %c0_6, %c0_7] : memref<4x16x128xf32, #tpu.memory_space<vmem>>, vector<4x16x128xf32>
    %6 = arith.truncf %5 : vector<4x16x128xf32> to vector<4x16x128xbf16>
    %7 = vector.extract_strided_slice %6 {offsets = [0, 0, 0], sizes = [4, 15, 128], strides = [1, 1, 1]} : vector<4x16x128xbf16> to vector<4x15x128xbf16>
    %c0_8 = arith.constant 0 : index
    %c1 = arith.constant 1 : index
    %c0_9 = arith.constant 0 : index
    %8 = vector.load %arg4[%c0_8, %c1, %c0_9] : memref<4x16x384xbf16, #tpu.memory_space<vmem>>, vector<4x15x128xbf16>
    tpu.vector_store %arg4[%c0_8, %c1, %c0_9], %7 {strides = array<i32>} : memref<4x16x384xbf16, #tpu.memory_space<vmem>>, vector<4x15x128xbf16>,
    %c0_10 = arith.constant 0 : index
    %c0_11 = arith.constant 0 : index
    %c128 = arith.constant 128 : index
    %9 = vector.load %arg4[%c0_10, %c0_11, %c128] : memref<4x16x384xbf16, #tpu.memory_space<vmem>>, vector<4x16x128xbf16>
    tpu.vector_store %arg4[%c0_10, %c0_11, %c128], %6 {strides = array<i32>} : memref<4x16x384xbf16, #tpu.memory_space<vmem>>, vector<4x16x128xbf16>,
    %10 = vector.extract_strided_slice %6 {offsets = [0, 1, 0], sizes = [4, 15, 128], strides = [1, 1, 1]} : vector<4x16x128xbf16> to vector<4x15x128xbf16>
    %c0_12 = arith.constant 0 : index
    %c0_13 = arith.constant 0 : index
    %c256_14 = arith.constant 256 : index
    %11 = vector.load %arg4[%c0_12, %c0_13, %c256_14] : memref<4x16x384xbf16, #tpu.memory_space<vmem>>, vector<4x15x128xbf16>
    tpu.vector_store %arg4[%c0_12, %c0_13, %c256_14], %10 {strides = array<i32>} : memref<4x16x384xbf16, #tpu.memory_space<vmem>>, vector<4x15x128xbf16>,
    %c0_15 = arith.constant 0 : index
    %c0_16 = arith.constant 0 : index
    %c0_17 = arith.constant 0 : index
    %12 = vector.load %arg4[%c0_15, %c0_16, %c0_17] : memref<4x16x384xbf16, #tpu.memory_space<vmem>>, vector<4x16x384xbf16>
    %13 = vector.shape_cast %12 : vector<4x16x384xbf16> to vector<64x384xbf16>
    %c0_18 = arith.constant 0 : index
    %c0_19 = arith.constant 0 : index
    %14 = vector.load %arg2[%c0_18, %c0_19] : memref<384x128xbf16, #tpu.memory_space<vmem>>, vector<384x128xbf16>
    %cst_20 = arith.constant dense<0.000000e+00> : vector<64x128xf32>
    %15 = tpu.matmul %13, %14, %cst_20 {dimension_numbers = #tpu.dot_dimension_numbers<[1], [0], [0], [1], [0, 0, 1, 1], [], []>} : vector<64x384xbf16>, vector<384x128xbf16>, vector<64x128xf32> -> vector<64x128xf32>
    %cst_21 = arith.constant dense<0.000000e+00> : vector<128xf32>
    %16 = vector.multi_reduction <add>, %15, %cst_21 [0] : vector<64x128xf32> to vector<128xf32>
    %17 = vector.shape_cast %16 : vector<128xf32> to vector<1x128xf32>
    %18 = arith.addf %3, %17 : vector<1x128xf32>
    %19 = arith.mulf %15, %15 : vector<64x128xf32>
    %cst_22 = arith.constant dense<0.000000e+00> : vector<128xf32>
    %20 = vector.multi_reduction <add>, %19, %cst_22 [0] : vector<64x128xf32> to vector<128xf32>
    %21 = vector.shape_cast %20 : vector<128xf32> to vector<1x128xf32>
    %22 = arith.addf %4, %21 : vector<1x128xf32>
    %23 = tpu.concatenate %18, %22 in 0 : vector<1x128xf32>, vector<1x128xf32> -> vector<2x128xf32>
    %24 = vector.shape_cast %23 : vector<2x128xf32> to vector<1x2x128xf32>
    %c0_23 = arith.constant 0 : index
    %c0_24 = arith.constant 0 : index
    %c0_25 = arith.constant 0 : index
    %25 = vector.load %arg3[%c0_23, %c0_24, %c0_25] : memref<1x2x128xf32, #tpu.memory_space<vmem>>, vector<1x2x128xf32>
    tpu.vector_store %arg3[%c0_23, %c0_24, %c0_25], %24 {strides = array<i32>} : memref<1x2x128xf32, #tpu.memory_space<vmem>>, vector<1x2x128xf32>,
    return
  }
  func.func @transform_0(%arg0: i32) -> (i32, i32, i32) {
    %c0_i32 = arith.constant 0 : i32
    %c0_i32_0 = arith.constant 0 : i32
    %c0_i32_1 = arith.constant 0 : i32
    return %arg0, %c0_i32, %c0_i32_0 : i32, i32, i32
  }
  func.func @transform_1(%arg0: i32) -> (i32, i32) {
    %c0_i32 = arith.constant 0 : i32
    %c0_i32_0 = arith.constant 0 : i32
    %c0_i32_1 = arith.constant 0 : i32
    return %c0_i32, %c0_i32_0 : i32, i32
  }
  func.func @transform_2(%arg0: i32) -> (i32, i32, i32) {
    %c0_i32 = arith.constant 0 : i32
    %c0_i32_0 = arith.constant 0 : i32
    %c0_i32_1 = arith.constant 0 : i32
    return %arg0, %c0_i32, %c0_i32_0 : i32, i32, i32
  }
}

module attributes {stable_mosaic.version = 11 : i64} {
  func.func @_fused_block_kernel(%arg0: i32, %arg1: memref<4x16x128xf32, #tpu.memory_space<vmem>>, %arg2: memref<1x128xf32, #tpu.memory_space<vmem>>, %arg3: memref<1x128xf32, #tpu.memory_space<vmem>>, %arg4: memref<384x128xbf16, #tpu.memory_space<vmem>>, %arg5: memref<384x128xbf16, #tpu.memory_space<vmem>>, %arg6: memref<4x16x128xbf16, #tpu.memory_space<vmem>>, %arg7: memref<1x2x128xf32, #tpu.memory_space<vmem>>, %arg8: memref<4x16x384xbf16, #tpu.memory_space<vmem>>) attributes {dimension_semantics = [#tpu.dimension_semantics<parallel>], iteration_bounds = array<i64: 2>, scalar_prefetch = 0 : i64, scratch_operands = 1 : i64, tpu.core_type = #tpu.core_type<tc>, window_params = [{transform_indices = @transform_0, window_bounds = array<i64: 4, 16, 128>}, {pipeline_mode = #tpu.pipeline_mode<synchronous>, transform_indices = @transform_1, window_bounds = array<i64: 1, 128>}, {pipeline_mode = #tpu.pipeline_mode<synchronous>, transform_indices = @transform_2, window_bounds = array<i64: 1, 128>}, {pipeline_mode = #tpu.pipeline_mode<synchronous>, transform_indices = @transform_3, window_bounds = array<i64: 384, 128>}, {pipeline_mode = #tpu.pipeline_mode<synchronous>, transform_indices = @transform_4, window_bounds = array<i64: 384, 128>}, {transform_indices = @transform_5, window_bounds = array<i64: 4, 16, 128>}, {transform_indices = @transform_6, window_bounds = array<i64: 1, 2, 128>}]} {
    %cst = arith.constant 0.000000e+00 : bf16
    %0 = vector.broadcast %cst : bf16 to vector<4x1x128xbf16>
    %c0 = arith.constant 0 : index
    %c0_0 = arith.constant 0 : index
    %c0_1 = arith.constant 0 : index
    %1 = vector.load %arg8[%c0, %c0_0, %c0_1] : memref<4x16x384xbf16, #tpu.memory_space<vmem>>, vector<4x1x128xbf16>
    tpu.vector_store %arg8[%c0, %c0_0, %c0_1], %0 {strides = array<i32>} : memref<4x16x384xbf16, #tpu.memory_space<vmem>>, vector<4x1x128xbf16>,
    %c0_2 = arith.constant 0 : index
    %c15 = arith.constant 15 : index
    %c256 = arith.constant 256 : index
    %2 = vector.load %arg8[%c0_2, %c15, %c256] : memref<4x16x384xbf16, #tpu.memory_space<vmem>>, vector<4x1x128xbf16>
    tpu.vector_store %arg8[%c0_2, %c15, %c256], %0 {strides = array<i32>} : memref<4x16x384xbf16, #tpu.memory_space<vmem>>, vector<4x1x128xbf16>,
    %c0_3 = arith.constant 0 : index
    %c0_4 = arith.constant 0 : index
    %3 = vector.load %arg2[%c0_3, %c0_4] : memref<1x128xf32, #tpu.memory_space<vmem>>, vector<1x128xf32>
    %c0_5 = arith.constant 0 : index
    %c0_6 = arith.constant 0 : index
    %4 = vector.load %arg3[%c0_5, %c0_6] : memref<1x128xf32, #tpu.memory_space<vmem>>, vector<1x128xf32>
    %cst_7 = arith.constant 0.000000e+00 : f32
    %5 = vector.broadcast %cst_7 : f32 to vector<1x128xf32>
    %cst_8 = arith.constant 0.000000e+00 : f32
    %6 = vector.broadcast %cst_8 : f32 to vector<1x128xf32>
    %c0_9 = arith.constant 0 : index
    %c0_10 = arith.constant 0 : index
    %c0_11 = arith.constant 0 : index
    %7 = vector.load %arg1[%c0_9, %c0_10, %c0_11] : memref<4x16x128xf32, #tpu.memory_space<vmem>>, vector<4x16x128xf32>
    %8 = arith.truncf %7 : vector<4x16x128xf32> to vector<4x16x128xbf16>
    %9 = vector.extract_strided_slice %8 {offsets = [0, 0, 0], sizes = [4, 15, 128], strides = [1, 1, 1]} : vector<4x16x128xbf16> to vector<4x15x128xbf16>
    %c0_12 = arith.constant 0 : index
    %c1 = arith.constant 1 : index
    %c0_13 = arith.constant 0 : index
    %10 = vector.load %arg8[%c0_12, %c1, %c0_13] : memref<4x16x384xbf16, #tpu.memory_space<vmem>>, vector<4x15x128xbf16>
    tpu.vector_store %arg8[%c0_12, %c1, %c0_13], %9 {strides = array<i32>} : memref<4x16x384xbf16, #tpu.memory_space<vmem>>, vector<4x15x128xbf16>,
    %c0_14 = arith.constant 0 : index
    %c0_15 = arith.constant 0 : index
    %c128 = arith.constant 128 : index
    %11 = vector.load %arg8[%c0_14, %c0_15, %c128] : memref<4x16x384xbf16, #tpu.memory_space<vmem>>, vector<4x16x128xbf16>
    tpu.vector_store %arg8[%c0_14, %c0_15, %c128], %8 {strides = array<i32>} : memref<4x16x384xbf16, #tpu.memory_space<vmem>>, vector<4x16x128xbf16>,
    %12 = vector.extract_strided_slice %8 {offsets = [0, 1, 0], sizes = [4, 15, 128], strides = [1, 1, 1]} : vector<4x16x128xbf16> to vector<4x15x128xbf16>
    %c0_16 = arith.constant 0 : index
    %c0_17 = arith.constant 0 : index
    %c256_18 = arith.constant 256 : index
    %13 = vector.load %arg8[%c0_16, %c0_17, %c256_18] : memref<4x16x384xbf16, #tpu.memory_space<vmem>>, vector<4x15x128xbf16>
    tpu.vector_store %arg8[%c0_16, %c0_17, %c256_18], %12 {strides = array<i32>} : memref<4x16x384xbf16, #tpu.memory_space<vmem>>, vector<4x15x128xbf16>,
    %c0_19 = arith.constant 0 : index
    %c0_20 = arith.constant 0 : index
    %c0_21 = arith.constant 0 : index
    %14 = vector.load %arg8[%c0_19, %c0_20, %c0_21] : memref<4x16x384xbf16, #tpu.memory_space<vmem>>, vector<4x16x384xbf16>
    %15 = vector.shape_cast %14 : vector<4x16x384xbf16> to vector<64x384xbf16>
    %c0_22 = arith.constant 0 : index
    %c0_23 = arith.constant 0 : index
    %16 = vector.load %arg4[%c0_22, %c0_23] : memref<384x128xbf16, #tpu.memory_space<vmem>>, vector<384x128xbf16>
    %cst_24 = arith.constant dense<0.000000e+00> : vector<64x128xf32>
    %17 = tpu.matmul %15, %16, %cst_24 {dimension_numbers = #tpu.dot_dimension_numbers<[1], [0], [0], [1], [0, 0, 1, 1], [], []>} : vector<64x384xbf16>, vector<384x128xbf16>, vector<64x128xf32> -> vector<64x128xf32>
    %18 = vector.broadcast %3 : vector<1x128xf32> to vector<64x128xf32>
    %19 = arith.mulf %17, %18 : vector<64x128xf32>
    %20 = vector.broadcast %4 : vector<1x128xf32> to vector<64x128xf32>
    %21 = arith.addf %19, %20 : vector<64x128xf32>
    %cst_25 = arith.constant 0.000000e+00 : f32
    %22 = vector.broadcast %cst_25 : f32 to vector<64x128xf32>
    %23 = arith.maximumf %21, %22 : vector<64x128xf32>
    %24 = arith.truncf %23 : vector<64x128xf32> to vector<64x128xbf16>
    %25 = vector.shape_cast %24 : vector<64x128xbf16> to vector<4x16x128xbf16>
    %26 = vector.extract_strided_slice %25 {offsets = [0, 0, 0], sizes = [4, 15, 128], strides = [1, 1, 1]} : vector<4x16x128xbf16> to vector<4x15x128xbf16>
    %c0_26 = arith.constant 0 : index
    %c1_27 = arith.constant 1 : index
    %c0_28 = arith.constant 0 : index
    %27 = vector.load %arg8[%c0_26, %c1_27, %c0_28] : memref<4x16x384xbf16, #tpu.memory_space<vmem>>, vector<4x15x128xbf16>
    tpu.vector_store %arg8[%c0_26, %c1_27, %c0_28], %26 {strides = array<i32>} : memref<4x16x384xbf16, #tpu.memory_space<vmem>>, vector<4x15x128xbf16>,
    %c0_29 = arith.constant 0 : index
    %c0_30 = arith.constant 0 : index
    %c128_31 = arith.constant 128 : index
    %28 = vector.load %arg8[%c0_29, %c0_30, %c128_31] : memref<4x16x384xbf16, #tpu.memory_space<vmem>>, vector<4x16x128xbf16>
    tpu.vector_store %arg8[%c0_29, %c0_30, %c128_31], %25 {strides = array<i32>} : memref<4x16x384xbf16, #tpu.memory_space<vmem>>, vector<4x16x128xbf16>,
    %29 = vector.extract_strided_slice %25 {offsets = [0, 1, 0], sizes = [4, 15, 128], strides = [1, 1, 1]} : vector<4x16x128xbf16> to vector<4x15x128xbf16>
    %c0_32 = arith.constant 0 : index
    %c0_33 = arith.constant 0 : index
    %c256_34 = arith.constant 256 : index
    %30 = vector.load %arg8[%c0_32, %c0_33, %c256_34] : memref<4x16x384xbf16, #tpu.memory_space<vmem>>, vector<4x15x128xbf16>
    tpu.vector_store %arg8[%c0_32, %c0_33, %c256_34], %29 {strides = array<i32>} : memref<4x16x384xbf16, #tpu.memory_space<vmem>>, vector<4x15x128xbf16>,
    %c0_35 = arith.constant 0 : index
    %c0_36 = arith.constant 0 : index
    %c0_37 = arith.constant 0 : index
    %31 = vector.load %arg8[%c0_35, %c0_36, %c0_37] : memref<4x16x384xbf16, #tpu.memory_space<vmem>>, vector<4x16x384xbf16>
    %32 = vector.shape_cast %31 : vector<4x16x384xbf16> to vector<64x384xbf16>
    %c0_38 = arith.constant 0 : index
    %c0_39 = arith.constant 0 : index
    %33 = vector.load %arg5[%c0_38, %c0_39] : memref<384x128xbf16, #tpu.memory_space<vmem>>, vector<384x128xbf16>
    %cst_40 = arith.constant dense<0.000000e+00> : vector<64x128xf32>
    %34 = tpu.matmul %32, %33, %cst_40 {dimension_numbers = #tpu.dot_dimension_numbers<[1], [0], [0], [1], [0, 0, 1, 1], [], []>} : vector<64x384xbf16>, vector<384x128xbf16>, vector<64x128xf32> -> vector<64x128xf32>
    %cst_41 = arith.constant dense<0.000000e+00> : vector<128xf32>
    %35 = vector.multi_reduction <add>, %34, %cst_41 [0] : vector<64x128xf32> to vector<128xf32>
    %36 = vector.shape_cast %35 : vector<128xf32> to vector<1x128xf32>
    %37 = arith.addf %5, %36 : vector<1x128xf32>
    %38 = arith.mulf %34, %34 : vector<64x128xf32>
    %cst_42 = arith.constant dense<0.000000e+00> : vector<128xf32>
    %39 = vector.multi_reduction <add>, %38, %cst_42 [0] : vector<64x128xf32> to vector<128xf32>
    %40 = vector.shape_cast %39 : vector<128xf32> to vector<1x128xf32>
    %41 = arith.addf %6, %40 : vector<1x128xf32>
    %42 = vector.shape_cast %34 : vector<64x128xf32> to vector<4x16x128xf32>
    %43 = arith.truncf %42 : vector<4x16x128xf32> to vector<4x16x128xbf16>
    %c0_43 = arith.constant 0 : index
    %c0_44 = arith.constant 0 : index
    %c0_45 = arith.constant 0 : index
    %44 = vector.load %arg6[%c0_43, %c0_44, %c0_45] : memref<4x16x128xbf16, #tpu.memory_space<vmem>>, vector<4x16x128xbf16>
    tpu.vector_store %arg6[%c0_43, %c0_44, %c0_45], %43 {strides = array<i32>} : memref<4x16x128xbf16, #tpu.memory_space<vmem>>, vector<4x16x128xbf16>,
    %45 = tpu.concatenate %37, %41 in 0 : vector<1x128xf32>, vector<1x128xf32> -> vector<2x128xf32>
    %46 = vector.shape_cast %45 : vector<2x128xf32> to vector<1x2x128xf32>
    %c0_46 = arith.constant 0 : index
    %c0_47 = arith.constant 0 : index
    %c0_48 = arith.constant 0 : index
    %47 = vector.load %arg7[%c0_46, %c0_47, %c0_48] : memref<1x2x128xf32, #tpu.memory_space<vmem>>, vector<1x2x128xf32>
    tpu.vector_store %arg7[%c0_46, %c0_47, %c0_48], %46 {strides = array<i32>} : memref<1x2x128xf32, #tpu.memory_space<vmem>>, vector<1x2x128xf32>,
    return
  }
  func.func @transform_0(%arg0: i32) -> (i32, i32, i32) {
    %c0_i32 = arith.constant 0 : i32
    %c0_i32_0 = arith.constant 0 : i32
    %c0_i32_1 = arith.constant 0 : i32
    return %arg0, %c0_i32, %c0_i32_0 : i32, i32, i32
  }
  func.func @transform_1(%arg0: i32) -> (i32, i32) {
    %c0_i32 = arith.constant 0 : i32
    %c0_i32_0 = arith.constant 0 : i32
    %c0_i32_1 = arith.constant 0 : i32
    return %c0_i32, %c0_i32_0 : i32, i32
  }
  func.func @transform_2(%arg0: i32) -> (i32, i32) {
    %c0_i32 = arith.constant 0 : i32
    %c0_i32_0 = arith.constant 0 : i32
    %c0_i32_1 = arith.constant 0 : i32
    return %c0_i32, %c0_i32_0 : i32, i32
  }
  func.func @transform_3(%arg0: i32) -> (i32, i32) {
    %c0_i32 = arith.constant 0 : i32
    %c0_i32_0 = arith.constant 0 : i32
    %c0_i32_1 = arith.constant 0 : i32
    return %c0_i32, %c0_i32_0 : i32, i32
  }
  func.func @transform_4(%arg0: i32) -> (i32, i32) {
    %c0_i32 = arith.constant 0 : i32
    %c0_i32_0 = arith.constant 0 : i32
    %c0_i32_1 = arith.constant 0 : i32
    return %c0_i32, %c0_i32_0 : i32, i32
  }
  func.func @transform_5(%arg0: i32) -> (i32, i32, i32) {
    %c0_i32 = arith.constant 0 : i32
    %c0_i32_0 = arith.constant 0 : i32
    %c0_i32_1 = arith.constant 0 : i32
    return %arg0, %c0_i32, %c0_i32_0 : i32, i32, i32
  }
  func.func @transform_6(%arg0: i32) -> (i32, i32, i32) {
    %c0_i32 = arith.constant 0 : i32
    %c0_i32_0 = arith.constant 0 : i32
    %c0_i32_1 = arith.constant 0 : i32
    return %arg0, %c0_i32, %c0_i32_0 : i32, i32, i32
  }
}

module attributes {stable_mosaic.version = 11 : i64} {
  func.func @_bn_residual_relu_kernel(%arg0: i32, %arg1: memref<4x16x128xbf16, #tpu.memory_space<vmem>>, %arg2: memref<1x128xf32, #tpu.memory_space<vmem>>, %arg3: memref<1x128xf32, #tpu.memory_space<vmem>>, %arg4: memref<4x16x128xf32, #tpu.memory_space<vmem>>, %arg5: memref<4x16x128xf32, #tpu.memory_space<vmem>>) attributes {dimension_semantics = [#tpu.dimension_semantics<parallel>], iteration_bounds = array<i64: 2>, scalar_prefetch = 0 : i64, scratch_operands = 0 : i64, tpu.core_type = #tpu.core_type<tc>, window_params = [{transform_indices = @transform_0, window_bounds = array<i64: 4, 16, 128>}, {pipeline_mode = #tpu.pipeline_mode<synchronous>, transform_indices = @transform_1, window_bounds = array<i64: 1, 128>}, {pipeline_mode = #tpu.pipeline_mode<synchronous>, transform_indices = @transform_2, window_bounds = array<i64: 1, 128>}, {transform_indices = @transform_3, window_bounds = array<i64: 4, 16, 128>}, {transform_indices = @transform_4, window_bounds = array<i64: 4, 16, 128>}]} {
    %c0 = arith.constant 0 : index
    %c0_0 = arith.constant 0 : index
    %c0_1 = arith.constant 0 : index
    %0 = vector.load %arg1[%c0, %c0_0, %c0_1] : memref<4x16x128xbf16, #tpu.memory_space<vmem>>, vector<4x16x128xbf16>
    %1 = arith.extf %0 : vector<4x16x128xbf16> to vector<4x16x128xf32>
    %c0_2 = arith.constant 0 : index
    %c0_3 = arith.constant 0 : index
    %2 = vector.load %arg2[%c0_2, %c0_3] : memref<1x128xf32, #tpu.memory_space<vmem>>, vector<1x128xf32>
    %3 = vector.shape_cast %2 : vector<1x128xf32> to vector<1x1x128xf32>
    %4 = vector.broadcast %3 : vector<1x1x128xf32> to vector<4x16x128xf32>
    %5 = arith.mulf %1, %4 : vector<4x16x128xf32>
    %c0_4 = arith.constant 0 : index
    %c0_5 = arith.constant 0 : index
    %6 = vector.load %arg3[%c0_4, %c0_5] : memref<1x128xf32, #tpu.memory_space<vmem>>, vector<1x128xf32>
    %7 = vector.shape_cast %6 : vector<1x128xf32> to vector<1x1x128xf32>
    %8 = vector.broadcast %7 : vector<1x1x128xf32> to vector<4x16x128xf32>
    %9 = arith.addf %5, %8 : vector<4x16x128xf32>
    %c0_6 = arith.constant 0 : index
    %c0_7 = arith.constant 0 : index
    %c0_8 = arith.constant 0 : index
    %10 = vector.load %arg4[%c0_6, %c0_7, %c0_8] : memref<4x16x128xf32, #tpu.memory_space<vmem>>, vector<4x16x128xf32>
    %11 = arith.addf %9, %10 : vector<4x16x128xf32>
    %cst = arith.constant 0.000000e+00 : f32
    %12 = vector.broadcast %cst : f32 to vector<4x16x128xf32>
    %13 = arith.maximumf %11, %12 : vector<4x16x128xf32>
    %c0_9 = arith.constant 0 : index
    %c0_10 = arith.constant 0 : index
    %c0_11 = arith.constant 0 : index
    %14 = vector.load %arg5[%c0_9, %c0_10, %c0_11] : memref<4x16x128xf32, #tpu.memory_space<vmem>>, vector<4x16x128xf32>
    tpu.vector_store %arg5[%c0_9, %c0_10, %c0_11], %13 {strides = array<i32>} : memref<4x16x128xf32, #tpu.memory_space<vmem>>, vector<4x16x128xf32>,
    return
  }
  func.func @transform_0(%arg0: i32) -> (i32, i32, i32) {
    %c0_i32 = arith.constant 0 : i32
    %c0_i32_0 = arith.constant 0 : i32
    %c0_i32_1 = arith.constant 0 : i32
    return %arg0, %c0_i32, %c0_i32_0 : i32, i32, i32
  }
  func.func @transform_1(%arg0: i32) -> (i32, i32) {
    %c0_i32 = arith.constant 0 : i32
    %c0_i32_0 = arith.constant 0 : i32
    %c0_i32_1 = arith.constant 0 : i32
    return %c0_i32, %c0_i32_0 : i32, i32
  }
  func.func @transform_2(%arg0: i32) -> (i32, i32) {
    %c0_i32 = arith.constant 0 : i32
    %c0_i32_0 = arith.constant 0 : i32
    %c0_i32_1 = arith.constant 0 : i32
    return %c0_i32, %c0_i32_0 : i32, i32
  }
  func.func @transform_3(%arg0: i32) -> (i32, i32, i32) {
    %c0_i32 = arith.constant 0 : i32
    %c0_i32_0 = arith.constant 0 : i32
    %c0_i32_1 = arith.constant 0 : i32
    return %arg0, %c0_i32, %c0_i32_0 : i32, i32, i32
  }
  func.func @transform_4(%arg0: i32) -> (i32, i32, i32) {
    %c0_i32 = arith.constant 0 : i32
    %c0_i32_0 = arith.constant 0 : i32
    %c0_i32_1 = arith.constant 0 : i32
    return %arg0, %c0_i32, %c0_i32_0 : i32, i32, i32
  }
}

</mosaic_0001>

<llo_original>
// kernel: tile.23
$region0: #{tile.23}
  #allocation0 [shape = 's32[1]{0}', space=sflag, size = 0x4, scoped, tag = 'scoped memory for tile.23']
  %s0 = inlined_call_operand.vmem [shape: f32[8], index: 0, kind: input, shape index: {}]
  %s1 = inlined_call_operand.vmem [shape: f32[16,8], index: 1, kind: output, shape index: {}]
  // Predicated region
  $region2: #{tile.23} parent=0 // pred_check
    _
  $region3: #{tile.23} parent=0 // pred_check_branch
    %3 = sbr.rel (0) target = $region5
  $region4: #{tile.23} parent=0 // pred_region
    _
  $region5: #{tile.23} parent=0 // pred_fallthru
    _
  %v4 = vld [vmem:[%s0] ss:$0 sm:$0xff]
  %5 = vst [vmem:[%s1] sm:$0xff] %v4
  %s6 = scalar_lea.vmem %s1, 8
  %7 = vst [vmem:[%s6] sm:$0xff] %v4

// kernel: tile.24
$region0: #{tile.24}
  %s0 = inlined_call_operand.vmem [shape: f32[16,8], index: 0, kind: input, shape index: {}]
  %s1 = inlined_call_operand.vmem [shape: f32[1,128], index: 1, kind: output, shape index: {}]
  $region1: #{tile.24} parent=0
    #allocation0 [shape = 'u8[4096]{0}', space=vmem, size = 0x1000, scoped, tag = 'scoped mem for output reshape']
    %v2 = vld [vmem:[%s0] sm:$0x1]
    %vm3 = vcmask 64512
    %4 = vst.msk [vmem:[#allocation0] sm:$0x1] %vm3, %v2
    %s5 = scalar_lea.vmem %s0, 15
    %v6 = vld [vmem:[%s5] sm:$0x1]
    %7 = vrot.lane.b32.xlu0 %v6, 120
    %v8 = vpop.permute.xlu0 %7
    %vm9 = vcmask 1048512
    %10 = vst.msk [vmem:[#allocation0] sm:$0x1] %vm9, %v8
    %s11 = scalar_lea.vmem %s0, 14
    %v12 = vld [vmem:[%s11] sm:$0x1]
    %13 = vrot.lane.b32.xlu0 %v12, 112
    %v14 = vpop.permute.xlu0 %13
    %vm15 = vcmask 982912
    %16 = vst.msk [vmem:[#allocation0] sm:$0x1] %vm15, %v14
    %s17 = scalar_lea.vmem %s0, 13
    %v18 = vld [vmem:[%s17] sm:$0x1]
    %19 = vrot.lane.b32.xlu0 %v18, 104
    %v20 = vpop.permute.xlu0 %19
    %vm21 = vcmask 917312
    %22 = vst.msk [vmem:[#allocation0] sm:$0x1] %vm21, %v20
    %s23 = scalar_lea.vmem %s0, 12
    %v24 = vld [vmem:[%s23] sm:$0x1]
    %25 = vrot.lane.b32.xlu0 %v24, 96
    %v26 = vpop.permute.xlu0 %25
    %vm27 = vcmask 851712
    %28 = vst.msk [vmem:[#allocation0] sm:$0x1] %vm27, %v26
    %s29 = scalar_lea.vmem %s0, 11
    %v30 = vld [vmem:[%s29] sm:$0x1]
    %31 = vrot.lane.b32.xlu0 %v30, 88
    %v32 = vpop.permute.xlu0 %31
    %vm33 = vcmask 786112
    %34 = vst.msk [vmem:[#allocation0] sm:$0x1] %vm33, %v32
    %s35 = scalar_lea.vmem %s0, 10
    %v36 = vld [vmem:[%s35] sm:$0x1]
    %37 = vrot.lane.b32.xlu0 %v36, 80
    %v38 = vpop.permute.xlu0 %37
    %vm39 = vcmask 720512
    %40 = vst.msk [vmem:[#allocation0] sm:$0x1] %vm39, %v38
    %s41 = scalar_lea.vmem %s0, 9
    %v42 = vld [vmem:[%s41] sm:$0x1]
    %43 = vrot.lane.b32.xlu0 %v42, 72
    %v44 = vpop.permute.xlu0 %43
    %vm45 = vcmask 654912
    %46 = vst.msk [vmem:[#allocation0] sm:$0x1] %vm45, %v44
    %s47 = scalar_lea.vmem %s0, 8
    %v48 = vld [vmem:[%s47] sm:$0x1]
    %49 = vrot.lane.b32.xlu0 %v48, 64
    %v50 = vpop.permute.xlu0 %49
    %vm51 = vcmask 589312
    %52 = vst.msk [vmem:[#allocation0] sm:$0x1] %vm51, %v50
    %s53 = scalar_lea.vmem %s0, 7
    %v54 = vld [vmem:[%s53] sm:$0x1]
    %55 = vrot.lane.b32.xlu0 %v54, 56
    %v56 = vpop.permute.xlu0 %55
    %vm57 = vcmask 523712
    %58 = vst.msk [vmem:[#allocation0] sm:$0x1] %vm57, %v56
    %s59 = scalar_lea.vmem %s0, 6
    %v60 = vld [vmem:[%s59] sm:$0x1]
    %61 = vrot.lane.b32.xlu0 %v60, 48
    %v62 = vpop.permute.xlu0 %61
    %vm63 = vcmask 458112
    %64 = vst.msk [vmem:[#allocation0] sm:$0x1] %vm63, %v62
    %s65 = scalar_lea.vmem %s0, 5
    %v66 = vld [vmem:[%s65] sm:$0x1]
    %67 = vrot.lane.b32.xlu0 %v66, 40
    %v68 = vpop.permute.xlu0 %67
    %vm69 = vcmask 392512
    %70 = vst.msk [vmem:[#allocation0] sm:$0x1] %vm69, %v68
    %s71 = scalar_lea.vmem %s0, 4
    %v72 = vld [vmem:[%s71] sm:$0x1]
    %73 = vrot.lane.b32.xlu0 %v72, 32
    %v74 = vpop.permute.xlu0 %73
    %vm75 = vcmask 326912
    %76 = vst.msk [vmem:[#allocation0] sm:$0x1] %vm75, %v74
    %s77 = scalar_lea.vmem %s0, 3
    %v78 = vld [vmem:[%s77] sm:$0x1]
    %79 = vrot.lane.b32.xlu0 %v78, 24
    %v80 = vpop.permute.xlu0 %79
    %vm81 = vcmask 261312
    %82 = vst.msk [vmem:[#allocation0] sm:$0x1] %vm81, %v80
    %s83 = scalar_lea.vmem %s0, 2
    %v84 = vld [vmem:[%s83] sm:$0x1]
    %85 = vrot.lane.b32.xlu0 %v84, 16
    %v86 = vpop.permute.xlu0 %85
    %vm87 = vcmask 195712
    %88 = vst.msk [vmem:[#allocation0] sm:$0x1] %vm87, %v86
    %s89 = scalar_lea.vmem %s0, 1
    %v90 = vld [vmem:[%s89] sm:$0x1]
    %91 = vrot.lane.b32.xlu0 %v90, 8
    %v92 = vpop.permute.xlu0 %91
    %vm93 = vcmask 130112
    %94 = vst.msk [vmem:[#allocation0] sm:$0x1] %vm93, %v92
    %s96 = sshll.u32 1, 1
    %s97 = ssub.s32 %s96, 1
    %v99 = vld [vmem:[#allocation0] sm:%s97]
    %s100 = sshll.u32 1, 1
    %s101 = ssub.s32 %s100, 1
    %102 = vst [vmem:[%s1] sm:%s101] %v99

// kernel: basic_block1.3
$region0: #{basic_block1.3}
  #allocation0 [shape = 'u32[]', space=smem, size = 0x4, offset = 0x4, fixed_abs, tag = 'smem constant byte address 0x4 - core index']
  #allocation1 [shape = 'u32[144,128]{1,0:T(1,128)}', space=vmem, size = 0x12000, scoped, tag = 'internal scratch']
  #allocation2 [shape = 'bf16[4,16,384]{2,1,0:T(8,128)(2,1)}', space=vmem, size = 0xc000, scoped, tag = 'scratch operand']
  %s0 = inlined_call_operand.vmem [shape: f32[8,16,128], index: 0, kind: input, shape index: {}]
  %s1 = inlined_call_operand.vmem [shape: bf16[384,128], index: 1, kind: input, shape index: {}]
  %s2 = inlined_call_operand.vmem [shape: f32[2,2,128], index: 2, kind: output, shape index: {}]
  %s3 = sld [smem:[#allocation0]]
  $region41: #{basic_block1.3} parent=0
    _
  %s5 = ssub.s32 1, %s3
  %s6 = scalar_select 0, %s5, %s3
  loop: start=0, step=1, limit=4
  $region2: #{basic_block1.3} parent=0 // loop_pre_header
    _
  $region3: #{basic_block1.3} parent=0 // loop_header
    %s8 = sphi 0, %s12
    %p9 = scmp.ge.s32.totalorder %s8, 4
    %s18 = sphi 0, %s20
    %s21 = sphi 0, %s18
    %s22 = sphi 0, %s21
    %s38 = sphi 0, %s22
    %s42 = sphi 0, %s42
    %s44 = sphi 0, %s42
    %s45 = sphi 0, %s44
    %s59 = sphi 0, %s45
    %s65 = sphi 0, %s67
    %s68 = sphi 0, %s65
    %s69 = sphi 0, %s68
    %s85 = sphi 0, %s69
  $region4: #{basic_block1.3} parent=0 // loop_header_branch
    %11 = sbr.rel (%p9) target = $region8
  $region5: #{basic_block1.3} parent=0 // loop_body
    %s13 = ssub.s32 %s8, 1
    %s14 = ssub.s32 %s8, 2
    %s15 = sadd.s32 %s8, 1
    %s16 = ssub.s32 %s8, %s15
    %p17 = scmp.eq.s32.totalorder %s16, 0
    %s19 = sadd.s32 %s18, 1
    %s20 = scalar_select %p17, %s18, %s19
    %p23 = pneg %p17
    %p24 = scmp.eq.s32.totalorder %s8, 1
    %p25 = por %p23, %p24
    %p26 = scmp.ne.s32.totalorder %s18, %s21
    %p27 = scmp.eq.s32.totalorder %s8, 0
    %p28 = por %p26, %p27
    %p29 = scmp.ne.s32.totalorder %s18, %s21
    %p30 = scmp.eq.s32.totalorder %s13, 1
    %p31 = por %p29, %p30
    %p32 = scmp.ne.s32.totalorder %s21, %s22
    %p33 = scmp.eq.s32.totalorder %s13, 0
    %p34 = por %p32, %p33
    %p35 = scmp.ne.s32.totalorder %s21, %s22
    %p36 = scmp.eq.s32.totalorder %s14, 1
    %p37 = por %p35, %p36
    %p39 = scmp.ne.s32.totalorder %s22, %s38
    %p40 = scmp.eq.s32.totalorder %s14, 0
    %p41 = por %p39, %p40
    %s43 = sadd.s32 %s42, 1
    %p46 = scmp.eq.s32.totalorder %s8, 1
    %p47 = scmp.ne.s32.totalorder %s42, %s44
    %p48 = scmp.eq.s32.totalorder %s8, 0
    %p49 = por %p47, %p48
    %p50 = scmp.ne.s32.totalorder %s42, %s44
    %p51 = scmp.eq.s32.totalorder %s13, 1
    %p52 = por %p50, %p51
    %p53 = scmp.ne.s32.totalorder %s44, %s45
    %p54 = scmp.eq.s32.totalorder %s13, 0
    %p55 = por %p53, %p54
    %p56 = scmp.ne.s32.totalorder %s44, %s45
    %p57 = scmp.eq.s32.totalorder %s14, 1
    %p58 = por %p56, %p57
    %p60 = scmp.ne.s32.totalorder %s45, %s59
    %p61 = scmp.eq.s32.totalorder %s14, 0
    %p62 = por %p60, %p61
    %s63 = ssub.s32 %s8, %s15
    %p64 = scmp.eq.s32.totalorder %s63, 0
    %s66 = sadd.s32 %s65, 1
    %s67 = scalar_select %p64, %s65, %s66
    %p70 = pneg %p64
    %p71 = scmp.eq.s32.totalorder %s8, 1
    %p72 = por %p70, %p71
    %p73 = scmp.ne.s32.totalorder %s65, %s68
    %p74 = scmp.eq.s32.totalorder %s8, 0
    %p75 = por %p73, %p74
    %p76 = scmp.ne.s32.totalorder %s65, %s68
    %p77 = scmp.eq.s32.totalorder %s13, 1
    %p78 = por %p76, %p77
    %p79 = scmp.ne.s32.totalorder %s68, %s69
    %p80 = scmp.eq.s32.totalorder %s13, 0
    %p81 = por %p79, %p80
    %p82 = scmp.ne.s32.totalorder %s68, %s69
    %p83 = scmp.eq.s32.totalorder %s14, 1
    %p84 = por %p82, %p83
    %p86 = scmp.ne.s32.totalorder %s69, %s85
    %p87 = scmp.eq.s32.totalorder %s14, 0
    %p88 = por %p86, %p87
    %p89 = scmp.le.s32.totalorder 1, %s8
    %p90 = scmp.lt.s32.totalorder %s8, 3
    %p91 = pnand %p89, %p90
    %p92 = pneg %p91
    // Predicated region
    $region9: #{basic_block1.3} parent=5 // pred_check
      _
    $region10: #{basic_block1.3} parent=5 // pred_check_branch
      %94 = sbr.rel (%p91) target = $region12
    $region11: #{basic_block1.3} parent=5 // pred_region
      %s95 = ssub.s32 %s8, 1
      // Predicated region
      $region13: #{basic_block1.3} parent=11 // pred_check
        %p96 = pneg %p55
      $region14: #{basic_block1.3} parent=11 // pred_check_branch
        %98 = sbr.rel (%p96) target = $region16
      $region15: #{basic_block1.3} parent=11 // pred_region
        _
      $region16: #{basic_block1.3} parent=11 // pred_fallthru
        _
    $region12: #{basic_block1.3} parent=5 // pred_fallthru
      _
    %p99 = scmp.lt.s32.totalorder %s8, 2
    // Predicated region
    $region17: #{basic_block1.3} parent=5 // pred_check
      %p100 = pneg %p99
    $region18: #{basic_block1.3} parent=5 // pred_check_branch
      %102 = sbr.rel (%p100) target = $region20
    $region19: #{basic_block1.3} parent=5 // pred_region
      // Predicated region
      $region21: #{basic_block1.3} parent=19 // pred_check
        %p103 = pneg %p28
      $region22: #{basic_block1.3} parent=19 // pred_check_branch
        %105 = sbr.rel (%p103) target = $region24
      $region23: #{basic_block1.3} parent=19 // pred_region
        %s106 = smul.u32 4, %s8
        %p107 = scmp.lt.s32.totalorder %s106, 7
        %s108 = scalar_select %p107, %s106, 7
        %s109 = smul.addr %s108, 2
        %s110 = smul.addr %s109, 8
        %s111 = scalar_lea.vmem %s0, %s110
        %s112 = smul.u32 4, %s8
      $region24: #{basic_block1.3} parent=19 // pred_fallthru
        _
    $region20: #{basic_block1.3} parent=5 // pred_fallthru
      _
    %p113 = scmp.le.s32.totalorder 1, %s8
    %p114 = scmp.lt.s32.totalorder %s8, 3
    %p115 = pnand %p113, %p114
    %p116 = pneg %p115
    // Predicated region
    $region25: #{basic_block1.3} parent=5 // pred_check
      _
    $region26: #{basic_block1.3} parent=5 // pred_check_branch
      %118 = sbr.rel (%p115) target = $region28
    $region27: #{basic_block1.3} parent=5 // pred_region
      %s119 = ssub.s32 %s8, 1
      %s120 = smul.u32 4, %s13
      %p121 = scmp.lt.s32.totalorder %s120, 7
      %s122 = scalar_select %p121, %s120, 7
      %s123 = smul.addr %s122, 2
      %s124 = smul.addr %s123, 8
      %s125 = scalar_lea.vmem %s0, %s124
      %p126 = pneg %p34
      %p127 = pneg %p31
      %p128 = pneg %p55
      %p129 = pneg %p52
      %p130 = pneg %p81
      %p131 = pneg %p78
      %p132 = scmp.lt.s32.totalorder %s13, 1
      %s133 = scalar_select %p132, %s13, 1
      %s134 = smul.addr %s133, 2
      %s135 = scalar_lea.vmem %s2, %s134
      %s136 = smul.u32 4, %s13
      %p137 = scmp.lt.s32.totalorder %s136, 7
      %s138 = scalar_select %p137, %s136, 7
      %s139 = smul.addr %s138, 2
      %s140 = smul.addr %s139, 8
      %s141 = scalar_lea.vmem %s0, %s140
      %s142 = smul.u32 4, %s13
      %p143 = scmp.lt.s32.totalorder %s13, 1
      %s144 = scalar_select %p143, %s13, 1
      %s145 = smul.addr %s144, 2
      %s146 = scalar_lea.vmem %s2, %s145
      %vm148 = vcmask 1040384
      %vm149 = vsmask.f32 256
      %vm150 = vmand %vm148, %vm149
      %v151 = vld [vmem:[#allocation2] sm:$0x1]
      %v152 = vsel %vm150, 0, %v151
      %153 = vst [vmem:[#allocation2] sm:$0x1] %v152
      %v154 = vld [vmem:[#allocation2 + $0x18] sm:$0x1]
      %v155 = vsel %vm150, 0, %v154
      %156 = vst [vmem:[#allocation2 + $0x18] sm:$0x1] %v155
      %v157 = vld [vmem:[#allocation2 + $0x30] sm:$0x1]
      %v158 = vsel %vm150, 0, %v157
      %159 = vst [vmem:[#allocation2 + $0x30] sm:$0x1] %v158
      %v160 = vld [vmem:[#allocation2 + $0x48] sm:$0x1]
      %v161 = vsel %vm150, 0, %v160
      %162 = vst [vmem:[#allocation2 + $0x48] sm:$0x1] %v161
      %vm163 = vcmask 1043459
      %vm164 = vsmask.f32 7950
      %vm165 = vmand %vm163, %vm164
      %v166 = vld [vmem:[#allocation2 + $0x14] sm:$0x8]
      %v167 = vsel %vm165, 0, %v166
      %168 = vst [vmem:[#allocation2 + $0x14] sm:$0x8] %v167
      %v169 = vld [vmem:[#allocation2 + $0x2c] sm:$0x8]
      %v170 = vsel %vm165, 0, %v169
      %171 = vst [vmem:[#allocation2 + $0x2c] sm:$0x8] %v170
      %v172 = vld [vmem:[#allocation2 + $0x44] sm:$0x8]
      %v173 = vsel %vm165, 0, %v172
      %174 = vst [vmem:[#allocation2 + $0x44] sm:$0x8] %v173
      %v175 = vld [vmem:[#allocation2 + $0x5c] sm:$0x8]
      %v176 = vsel %vm165, 0, %v175
      %177 = vst [vmem:[#allocation2 + $0x5c] sm:$0x8] %v176
      %v178 = vld [vmem:[%s141] sm:$0xff]
      %v179 = vld [vmem:[%s141 + $0x8] sm:$0xff]
      %v180 = vld [vmem:[%s141 + $0x10] sm:$0xff]
      %v181 = vld [vmem:[%s141 + $0x18] sm:$0xff]
      %v182 = vld [vmem:[%s141 + $0x20] sm:$0xff]
      %v183 = vld [vmem:[%s141 + $0x28] sm:$0xff]
      %v184 = vld [vmem:[%s141 + $0x30] sm:$0xff]
      %v185 = vld [vmem:[%s141 + $0x38] sm:$0xff]
      %v186 = vpack.c.bf16 %v179, %v178
      %v187 = vpack.c.bf16 %v181, %v180
      %v188 = vpack.c.bf16 %v183, %v182
      %v189 = vpack.c.bf16 %v185, %v184
      %v194 = vunpack.c.l.b16 %v186
      %v195 = vunpack.c.h.b16 %v186
      %v196 = vunpack.c.l.b16 %v187
      %v197 = vunpack.c.h.b16 %v187
      %v198 = vunpack.c.l.b16 %v188
      %v199 = vunpack.c.h.b16 %v188
      %v200 = vunpack.c.l.b16 %v189
      %v201 = vunpack.c.h.b16 %v189
      %v202 = vpack.c.b16 %v194, %v194
      %v203 = vpack.c.b16 %v195, %v195
      %v204 = vpack.c.b16 %v196, %v196
      %v205 = vpack.c.b16 %v197, %v197
      %v206 = vpack.c.b16 %v198, %v198
      %v207 = vpack.c.b16 %v199, %v199
      %v208 = vpack.c.b16 %v200, %v200
      %v209 = vpack.c.b16 %v201, %v201
      %vm210 = vsmask.f32 4368
      %vm211 = vmor %vm149, %vm210
      %v213 = vshrl.u32 %v202, 16
      %v215 = vrot.slane %v213, 7
      %v216 = vshll.u32 %v202, 16
      %v218 = vor.u32 %v215, %v216
      %v219 = vrot.slane %v215, 4
      %v221 = vshrl.u32 %v203, 16
      %v223 = vrot.slane %v221, 7
      %v224 = vshll.u32 %v203, 16
      %v226 = vor.u32 %v223, %v224
      %v227 = vsel %vm211, %v219, %v226
      %v229 = vshrl.u32 %v204, 16
      %v231 = vrot.slane %v229, 7
      %v232 = vshll.u32 %v204, 16
      %v234 = vor.u32 %v231, %v232
      %v235 = vrot.slane %v231, 4
      %v237 = vshrl.u32 %v205, 16
      %v239 = vrot.slane %v237, 7
      %v240 = vshll.u32 %v205, 16
      %v242 = vor.u32 %v239, %v240
      %v243 = vsel %vm211, %v235, %v242
      %v245 = vshrl.u32 %v206, 16
      %v247 = vrot.slane %v245, 7
      %v248 = vshll.u32 %v206, 16
      %v250 = vor.u32 %v247, %v248
      %v251 = vrot.slane %v247, 4
      %v253 = vshrl.u32 %v207, 16
      %v255 = vrot.slane %v253, 7
      %v256 = vshll.u32 %v207, 16
      %v258 = vor.u32 %v255, %v256
      %v259 = vsel %vm211, %v251, %v258
      %v261 = vshrl.u32 %v208, 16
      %v263 = vrot.slane %v261, 7
      %v264 = vshll.u32 %v208, 16
      %v266 = vor.u32 %v263, %v264
      %v267 = vrot.slane %v263, 4
      %v269 = vshrl.u32 %v209, 16
      %v271 = vrot.slane %v269, 7
      %v272 = vshll.u32 %v209, 16
      %v274 = vor.u32 %v271, %v272
      %v275 = vsel %vm211, %v267, %v274
      %vm284 = vcmask 1043456
      %vm285 = vsmask.f32 7938
      %vm286 = vmand %vm284, %vm285
      %v287 = vld [vmem:[#allocation2] sm:$0xf]
      %v288 = vsel %vm286, %v218, %v287
      %289 = vst [vmem:[#allocation2] sm:$0xf] %v288
      %290 = vst [vmem:[#allocation2 + $0xc] sm:$0xf] %v227
      %v291 = vld [vmem:[#allocation2 + $0x18] sm:$0xf]
      %v292 = vsel %vm286, %v234, %v291
      %293 = vst [vmem:[#allocation2 + $0x18] sm:$0xf] %v292
      %294 = vst [vmem:[#allocation2 + $0x24] sm:$0xf] %v243
      %v295 = vld [vmem:[#allocation2 + $0x30] sm:$0xf]
      %v296 = vsel %vm286, %v250, %v295
      %297 = vst [vmem:[#allocation2 + $0x30] sm:$0xf] %v296
      %298 = vst [vmem:[#allocation2 + $0x3c] sm:$0xf] %v259
      %v299 = vld [vmem:[#allocation2 + $0x48] sm:$0xf]
      %v300 = vsel %vm286, %v266, %v299
      %301 = vst [vmem:[#allocation2 + $0x48] sm:$0xf] %v300
      %302 = vst [vmem:[#allocation2 + $0x54] sm:$0xf] %v275
      %311 = vst [vmem:[#allocation2 + $0x4] sm:$0xf] %v202
      %312 = vst [vmem:[#allocation2 + $0x10] sm:$0xf] %v203
      %313 = vst [vmem:[#allocation2 + $0x1c] sm:$0xf] %v204
      %314 = vst [vmem:[#allocation2 + $0x28] sm:$0xf] %v205
      %315 = vst [vmem:[#allocation2 + $0x34] sm:$0xf] %v206
      %316 = vst [vmem:[#allocation2 + $0x40] sm:$0xf] %v207
      %317 = vst [vmem:[#allocation2 + $0x4c] sm:$0xf] %v208
      %318 = vst [vmem:[#allocation2 + $0x58] sm:$0xf] %v209
      %vm319 = vsmask.f32 3328
      %vm320 = vsmask.f32 7440
      %vm321 = vmor %vm319, %vm320
      %v322 = vrot.slane %v213, 4
      %v323 = vrot.slane %v216, 5
      %v324 = vor.u32 %v322, %v323
      %v325 = vrot.slane %v324, 4
      %v326 = vrot.slane %v224, 5
      %v327 = vsel %vm321, %v325, %v326
      %v328 = vrot.slane %v221, 4
      %v329 = vor.u32 %v328, %v326
      %v330 = vrot.slane %v329, 4
      %v331 = vrot.slane %v229, 4
      %v332 = vrot.slane %v232, 5
      %v333 = vor.u32 %v331, %v332
      %v334 = vrot.slane %v333, 4
      %v335 = vrot.slane %v240, 5
      %v336 = vsel %vm321, %v334, %v335
      %v337 = vrot.slane %v237, 4
      %v338 = vor.u32 %v337, %v335
      %v339 = vrot.slane %v338, 4
      %v340 = vrot.slane %v245, 4
      %v341 = vrot.slane %v248, 5
      %v342 = vor.u32 %v340, %v341
      %v343 = vrot.slane %v342, 4
      %v344 = vrot.slane %v256, 5
      %v345 = vsel %vm321, %v343, %v344
      %v346 = vrot.slane %v253, 4
      %v347 = vor.u32 %v346, %v344
      %v348 = vrot.slane %v347, 4
      %v349 = vrot.slane %v261, 4
      %v350 = vrot.slane %v264, 5
      %v351 = vor.u32 %v349, %v350
      %v352 = vrot.slane %v351, 4
      %v353 = vrot.slane %v272, 5
      %v354 = vsel %vm321, %v352, %v353
      %v355 = vrot.slane %v269, 4
      %v356 = vor.u32 %v355, %v353
      %v357 = vrot.slane %v356, 4
      %366 = vst [vmem:[#allocation2 + $0x8] sm:$0xf] %v327
      %vm367 = vmand %vm284, %vm319
      %v368 = vld [vmem:[#allocation2 + $0x14] sm:$0xf]
      %v369 = vsel %vm367, %v330, %v368
      %370 = vst [vmem:[#allocation2 + $0x14] sm:$0xf] %v369
      %371 = vst [vmem:[#allocation2 + $0x20] sm:$0xf] %v336
      %v372 = vld [vmem:[#allocation2 + $0x2c] sm:$0xf]
      %v373 = vsel %vm367, %v339, %v372
      %374 = vst [vmem:[#allocation2 + $0x2c] sm:$0xf] %v373
      %375 = vst [vmem:[#allocation2 + $0x38] sm:$0xf] %v345
      %v376 = vld [vmem:[#allocation2 + $0x44] sm:$0xf]
      %v377 = vsel %vm367, %v348, %v376
      %378 = vst [vmem:[#allocation2 + $0x44] sm:$0xf] %v377
      %379 = vst [vmem:[#allocation2 + $0x50] sm:$0xf] %v354
      %v380 = vld [vmem:[#allocation2 + $0x5c] sm:$0xf]
      %v381 = vsel %vm367, %v357, %v380
      %382 = vst [vmem:[#allocation2 + $0x5c] sm:$0xf] %v381
      %v383 = vld [vmem:[#allocation2] sm:$0xff]
      %v384 = vld [vmem:[#allocation2 + $0x8] sm:$0xf]
      %v385 = vld [vmem:[#allocation2 + $0xc] sm:$0xff]
      %v386 = vld [vmem:[#allocation2 + $0x14] sm:$0xf]
      %v387 = vld [vmem:[#allocation2 + $0x18] sm:$0xff]
      %v388 = vld [vmem:[#allocation2 + $0x20] sm:$0xf]
      %v389 = vld [vmem:[#allocation2 + $0x24] sm:$0xff]
      %v390 = vld [vmem:[#allocation2 + $0x2c] sm:$0xf]
      %v391 = vld [vmem:[#allocation2 + $0x30] sm:$0xff]
      %v392 = vld [vmem:[#allocation2 + $0x38] sm:$0xf]
      %v393 = vld [vmem:[#allocation2 + $0x3c] sm:$0xff]
      %v394 = vld [vmem:[#allocation2 + $0x44] sm:$0xf]
      %v395 = vld [vmem:[#allocation2 + $0x48] sm:$0xff]
      %v396 = vld [vmem:[#allocation2 + $0x50] sm:$0xf]
      %v397 = vld [vmem:[#allocation2 + $0x54] sm:$0xff]
      %v398 = vld [vmem:[#allocation2 + $0x5c] sm:$0xf]
      %v399 = vld [vmem:[%s1] sm:$0xf]
      %v400 = vld [vmem:[%s1 + $0x4] sm:$0xf]
      %v401 = vld [vmem:[%s1 + $0x8] sm:$0xf]
      %v402 = vld [vmem:[%s1 + $0xc] sm:$0xf]
      %v403 = vld [vmem:[%s1 + $0x10] sm:$0xf]
      %v404 = vld [vmem:[%s1 + $0x14] sm:$0xf]
      %v405 = vld [vmem:[%s1 + $0x18] sm:$0xf]
      %v406 = vld [vmem:[%s1 + $0x1c] sm:$0xf]
      %v407 = vld [vmem:[%s1 + $0x20] sm:$0xf]
      %v408 = vld [vmem:[%s1 + $0x24] sm:$0xf]
      %v409 = vld [vmem:[%s1 + $0x28] sm:$0xf]
      %v410 = vld [vmem:[%s1 + $0x2c] sm:$0xf]
      %v411 = vld [vmem:[%s1 + $0x30] sm:$0xf]
      %v412 = vld [vmem:[%s1 + $0x34] sm:$0xf]
      %v413 = vld [vmem:[%s1 + $0x38] sm:$0xf]
      %v414 = vld [vmem:[%s1 + $0x3c] sm:$0xf]
      %v415 = vld [vmem:[%s1 + $0x40] sm:$0xf]
      %v416 = vld [vmem:[%s1 + $0x44] sm:$0xf]
      %v417 = vld [vmem:[%s1 + $0x48] sm:$0xf]
      %v418 = vld [vmem:[%s1 + $0x4c] sm:$0xf]
      %v419 = vld [vmem:[%s1 + $0x50] sm:$0xf]
      %v420 = vld [vmem:[%s1 + $0x54] sm:$0xf]
      %v421 = vld [vmem:[%s1 + $0x58] sm:$0xf]
      %v422 = vld [vmem:[%s1 + $0x5c] sm:$0xf]
      %v423 = vld [vmem:[%s1 + $0x60] sm:$0xf]
      %v424 = vld [vmem:[%s1 + $0x64] sm:$0xf]
      %v425 = vld [vmem:[%s1 + $0x68] sm:$0xf]
      %v426 = vld [vmem:[%s1 + $0x6c] sm:$0xf]
      %v427 = vld [vmem:[%s1 + $0x70] sm:$0xf]
      %v428 = vld [vmem:[%s1 + $0x74] sm:$0xf]
      %v429 = vld [vmem:[%s1 + $0x78] sm:$0xf]
      %v430 = vld [vmem:[%s1 + $0x7c] sm:$0xf]
      %v431 = vld [vmem:[%s1 + $0x80] sm:$0xf]
      %v432 = vld [vmem:[%s1 + $0x84] sm:$0xf]
      %v433 = vld [vmem:[%s1 + $0x88] sm:$0xf]
      %v434 = vld [vmem:[%s1 + $0x8c] sm:$0xf]
      %v435 = vld [vmem:[%s1 + $0x90] sm:$0xf]
      %v436 = vld [vmem:[%s1 + $0x94] sm:$0xf]
      %v437 = vld [vmem:[%s1 + $0x98] sm:$0xf]
      %v438 = vld [vmem:[%s1 + $0x9c] sm:$0xf]
      %v439 = vld [vmem:[%s1 + $0xa0] sm:$0xf]
      %v440 = vld [vmem:[%s1 + $0xa4] sm:$0xf]
      %v441 = vld [vmem:[%s1 + $0xa8] sm:$0xf]
      %v442 = vld [vmem:[%s1 + $0xac] sm:$0xf]
      %v443 = vld [vmem:[%s1 + $0xb0] sm:$0xf]
      %v444 = vld [vmem:[%s1 + $0xb4] sm:$0xf]
      %v445 = vld [vmem:[%s1 + $0xb8] sm:$0xf]
      %v446 = vld [vmem:[%s1 + $0xbc] sm:$0xf]
      %v463 = vunpack.c.l.b16 %v383
      %v464 = vunpack.c.h.b16 %v383
      %v465 = vunpack.c.l.b16 %v384
      %v466 = vunpack.c.l.b16 %v385
      %v467 = vunpack.c.h.b16 %v385
      %v468 = vunpack.c.l.b16 %v386
      %v469 = vunpack.c.l.b16 %v387
      %v470 = vunpack.c.h.b16 %v387
      %v471 = vunpack.c.l.b16 %v388
      %v472 = vunpack.c.l.b16 %v389
      %v473 = vunpack.c.h.b16 %v389
      %v474 = vunpack.c.l.b16 %v390
      %v475 = vunpack.c.l.b16 %v391
      %v476 = vunpack.c.h.b16 %v391
      %v477 = vunpack.c.l.b16 %v392
      %v478 = vunpack.c.l.b16 %v393
      %v479 = vunpack.c.h.b16 %v393
      %v480 = vunpack.c.l.b16 %v394
      %v481 = vunpack.c.l.b16 %v395
      %v482 = vunpack.c.h.b16 %v395
      %v483 = vunpack.c.l.b16 %v396
      %v484 = vunpack.c.l.b16 %v397
      %v485 = vunpack.c.h.b16 %v397
      %v486 = vunpack.c.l.b16 %v398
      %v487 = vpack.c.b16 %v466, %v463
      %v488 = vpack.c.b16 %v467, %v464
      %v489 = vpack.c.b16 %v468, %v465
      %v490 = vpack.c.b16 %v472, %v469
      %v491 = vpack.c.b16 %v473, %v470
      %v492 = vpack.c.b16 %v474, %v471
      %v493 = vpack.c.b16 %v478, %v475
      %v494 = vpack.c.b16 %v479, %v476
      %v495 = vpack.c.b16 %v480, %v477
      %v496 = vpack.c.b16 %v484, %v481
      %v497 = vpack.c.b16 %v485, %v482
      %v498 = vpack.c.b16 %v486, %v483
      %v559 = vunpack.c.l.b16 %v399
      %v560 = vunpack.c.l.b16 %v400
      %v561 = vunpack.c.l.b16 %v401
      %v562 = vunpack.c.l.b16 %v402
      %v563 = vunpack.c.l.b16 %v403
      %v564 = vunpack.c.l.b16 %v404
      %v565 = vunpack.c.l.b16 %v405
      %v566 = vunpack.c.l.b16 %v406
      %v567 = vunpack.c.l.b16 %v407
      %v568 = vunpack.c.l.b16 %v408
      %v569 = vunpack.c.l.b16 %v409
      %v570 = vunpack.c.l.b16 %v410
      %v571 = vunpack.c.l.b16 %v411
      %v572 = vunpack.c.l.b16 %v412
      %v573 = vunpack.c.l.b16 %v413
      %v574 = vunpack.c.l.b16 %v414
      %v575 = vunpack.c.l.b16 %v415
      %v576 = vunpack.c.l.b16 %v416
      %v577 = vunpack.c.l.b16 %v417
      %v578 = vunpack.c.l.b16 %v418
      %v579 = vunpack.c.l.b16 %v419
      %v580 = vunpack.c.l.b16 %v420
      %v581 = vunpack.c.l.b16 %v421
      %v582 = vunpack.c.l.b16 %v422
      %v583 = vunpack.c.l.b16 %v423
      %v584 = vunpack.c.l.b16 %v424
      %v585 = vunpack.c.l.b16 %v425
      %v586 = vunpack.c.l.b16 %v426
      %v587 = vunpack.c.l.b16 %v427
      %v588 = vunpack.c.l.b16 %v428
      %v589 = vunpack.c.l.b16 %v429
      %v590 = vunpack.c.l.b16 %v430
      %v591 = vunpack.c.l.b16 %v431
      %v592 = vunpack.c.l.b16 %v432
      %v593 = vunpack.c.l.b16 %v433
      %v594 = vunpack.c.l.b16 %v434
      %v595 = vunpack.c.l.b16 %v435
      %v596 = vunpack.c.l.b16 %v436
      %v597 = vunpack.c.l.b16 %v437
      %v598 = vunpack.c.l.b16 %v438
      %v599 = vunpack.c.l.b16 %v439
      %v600 = vunpack.c.l.b16 %v440
      %v601 = vunpack.c.l.b16 %v441
      %v602 = vunpack.c.l.b16 %v442
      %v603 = vunpack.c.l.b16 %v443
      %v604 = vunpack.c.l.b16 %v444
      %v605 = vunpack.c.l.b16 %v445
      %v606 = vunpack.c.l.b16 %v446
      %v607 = vpack.c.b16 %v560, %v559
      %v608 = vpack.c.b16 %v562, %v561
      %v609 = vpack.c.b16 %v564, %v563
      %v610 = vpack.c.b16 %v566, %v565
      %v611 = vpack.c.b16 %v568, %v567
      %v612 = vpack.c.b16 %v570, %v569
      %v613 = vpack.c.b16 %v572, %v571
      %v614 = vpack.c.b16 %v574, %v573
      %v615 = vpack.c.b16 %v576, %v575
      %v616 = vpack.c.b16 %v578, %v577
      %v617 = vpack.c.b16 %v580, %v579
      %v618 = vpack.c.b16 %v582, %v581
      %v619 = vpack.c.b16 %v584, %v583
      %v620 = vpack.c.b16 %v586, %v585
      %v621 = vpack.c.b16 %v588, %v587
      %v622 = vpack.c.b16 %v590, %v589
      %v623 = vpack.c.b16 %v592, %v591
      %v624 = vpack.c.b16 %v594, %v593
      %v625 = vpack.c.b16 %v596, %v595
      %v626 = vpack.c.b16 %v598, %v597
      %v627 = vpack.c.b16 %v600, %v599
      %v628 = vpack.c.b16 %v602, %v601
      %v629 = vpack.c.b16 %v604, %v603
      %v630 = vpack.c.b16 %v606, %v605
      %655 = vmatprep.subr.bf16.mxu0 0
      %656 = vmatpush1.bf16.msra.mxu0 %v614
      %657 = vmatprep.subr.bf16.mxu0 0
      %658 = vmatpush1.bf16.msra.mxu0 %v613
      %659 = vmatprep.subr.bf16.mxu0 0
      %660 = vmatpush1.bf16.msra.mxu0 %v612
      %661 = vmatprep.subr.bf16.mxu0 0
      %662 = vmatpush1.bf16.msra.mxu0 %v611
      %663 = vmatprep.subr.bf16.mxu0 0
      %664 = vmatpush1.bf16.msra.mxu0 %v610
      %665 = vmatprep.subr.bf16.mxu0 0
      %666 = vmatpush1.bf16.msra.mxu0 %v609
      %667 = vmatprep.subr.bf16.mxu0 0
      %668 = vmatpush1.bf16.msra.mxu0 %v608
      %669 = vmatprep.subr.bf16.mxu0 0
      %670 = vmatpush1.bf16.msra.mxu0 %v607
      %671 = vmatprep.subr.bf16.mxu0 0
      %672 = vmatpush2.bf16.msra.mxu0 %v622
      %673 = vmatprep.subr.bf16.mxu0 0
      %674 = vmatpush2.bf16.msra.mxu0 %v621
      %675 = vmatprep.subr.bf16.mxu0 0
      %676 = vmatpush2.bf16.msra.mxu0 %v620
      %677 = vmatprep.subr.bf16.mxu0 0
      %678 = vmatpush2.bf16.msra.mxu0 %v619
      %679 = vmatprep.subr.bf16.mxu0 0
      %680 = vmatpush2.bf16.msra.mxu0 %v618
      %681 = vmatprep.subr.bf16.mxu0 0
      %682 = vmatpush2.bf16.msra.mxu0 %v617
      %683 = vmatprep.subr.bf16.mxu0 0
      %684 = vmatpush2.bf16.msra.mxu0 %v616
      %685 = vmatprep.subr.bf16.mxu0 0
      %686 = vmatpush2.bf16.msra.mxu0 %v615
      %687 = vmatprep.mubr.bf16.mxu0 %v488
      %688 = vmatmul.mubr.bf16.gmra.mxu0 %v487
      %v689 = vpop.f32.mrf.mxu0
      %v690 = vadd.f32 0.0, %v689
      %v691 = vpop.f32.mrf.mxu0
      %v692 = vpop.f32.mrf.mxu0
      %v693 = vadd.f32 0.0, %v692
      %v694 = vpop.f32.mrf.mxu0
      %695 = vmatprep.mubr.bf16.mxu0 %v491
      %696 = vmatmul.mubr.bf16.gmra.mxu0 %v490
      %v697 = vpop.f32.mrf.mxu0
      %v698 = vadd.f32 0.0, %v697
      %v699 = vpop.f32.mrf.mxu0
      %v700 = vpop.f32.mrf.mxu0
      %v701 = vadd.f32 0.0, %v700
      %v702 = vpop.f32.mrf.mxu0
      %703 = vmatprep.mubr.bf16.mxu0 %v494
      %704 = vmatmul.mubr.bf16.gmra.mxu0 %v493
      %v705 = vpop.f32.mrf.mxu0
      %v706 = vadd.f32 0.0, %v705
      %v707 = vpop.f32.mrf.mxu0
      %v708 = vpop.f32.mrf.mxu0
      %v709 = vadd.f32 0.0, %v708
      %v710 = vpop.f32.mrf.mxu0
      %711 = vmatprep.mubr.bf16.mxu0 %v497
      %712 = vmatmul.mubr.bf16.gmra.mxu0 %v496
      %v713 = vpop.f32.mrf.mxu0
      %v714 = vadd.f32 0.0, %v713
      %v715 = vpop.f32.mrf.mxu0
      %v716 = vpop.f32.mrf.mxu0
      %v717 = vadd.f32 0.0, %v716
      %v718 = vpop.f32.mrf.mxu0
      %719 = vdwg.mxu0
      %720 = vmatprep.subr.bf16.mxu0 0
      %721 = vmatpush1.bf16.msra.mxu0 %v630
      %722 = vmatprep.subr.bf16.mxu0 0
      %723 = vmatpush1.bf16.msra.mxu0 %v629
      %724 = vmatprep.subr.bf16.mxu0 0
      %725 = vmatpush1.bf16.msra.mxu0 %v628
      %726 = vmatprep.subr.bf16.mxu0 0
      %727 = vmatpush1.bf16.msra.mxu0 %v627
      %728 = vmatprep.subr.bf16.mxu0 0
      %729 = vmatpush1.bf16.msra.mxu0 %v626
      %730 = vmatprep.subr.bf16.mxu0 0
      %731 = vmatpush1.bf16.msra.mxu0 %v625
      %732 = vmatprep.subr.bf16.mxu0 0
      %733 = vmatpush1.bf16.msra.mxu0 %v624
      %734 = vmatprep.subr.bf16.mxu0 0
      %735 = vmatpush1.bf16.msra.mxu0 %v623
      %736 = vmatprep.subr.bf16.mxu0 0
      %737 = vmatpush2.bf16.msra.mxu0 0
      %738 = vmatprep.subr.bf16.mxu0 0
      %739 = vmatpush2.bf16.msra.mxu0 0
      %740 = vmatprep.subr.bf16.mxu0 0
      %741 = vmatpush2.bf16.msra.mxu0 0
      %742 = vmatprep.subr.bf16.mxu0 0
      %743 = vmatpush2.bf16.msra.mxu0 0
      %744 = vmatprep.subr.bf16.mxu0 0
      %745 = vmatpush2.bf16.msra.mxu0 0
      %746 = vmatprep.subr.bf16.mxu0 0
      %747 = vmatpush2.bf16.msra.mxu0 0
      %748 = vmatprep.subr.bf16.mxu0 0
      %749 = vmatpush2.bf16.msra.mxu0 0
      %750 = vmatprep.subr.bf16.mxu0 0
      %751 = vmatpush2.bf16.msra.mxu0 0
      %752 = vmatprep.mubr.bf16.mxu0 0
      %753 = vmatmul.mubr.bf16.gmra.mxu0 %v489
      %v754 = vpop.f32.mrf.mxu0
      %v755 = vadd.f32 %v690, %v754
      %v756 = vpop.f32.mrf.mxu0
      %v757 = vpop.f32.mrf.mxu0
      %v758 = vadd.f32 %v693, %v757
      %v759 = vpop.f32.mrf.mxu0
      %760 = vmatprep.mubr.bf16.mxu0 0
      %761 = vmatmul.mubr.bf16.gmra.mxu0 %v492
      %v762 = vpop.f32.mrf.mxu0
      %v763 = vadd.f32 %v698, %v762
      %v764 = vpop.f32.mrf.mxu0
      %v765 = vpop.f32.mrf.mxu0
      %v766 = vadd.f32 %v701, %v765
      %v767 = vpop.f32.mrf.mxu0
      %768 = vmatprep.mubr.bf16.mxu0 0
      %769 = vmatmul.mubr.bf16.gmra.mxu0 %v495
      %v770 = vpop.f32.mrf.mxu0
      %v771 = vadd.f32 %v706, %v770
      %v772 = vpop.f32.mrf.mxu0
      %v773 = vpop.f32.mrf.mxu0
      %v774 = vadd.f32 %v709, %v773
      %v775 = vpop.f32.mrf.mxu0
      %776 = vmatprep.mubr.bf16.mxu0 0
      %777 = vmatmul.mubr.bf16.gmra.mxu0 %v498
      %v778 = vpop.f32.mrf.mxu0
      %v779 = vadd.f32 %v714, %v778
      %v780 = vpop.f32.mrf.mxu0
      %v781 = vpop.f32.mrf.mxu0
      %v782 = vadd.f32 %v717, %v781
      %v783 = vpop.f32.mrf.mxu0
      %784 = vdwg.mxu0
      %v785 = vadd.f32 %v755, %v758
      %v786 = vadd.f32 %v785, %v763
      %v787 = vadd.f32 %v786, %v766
      %v788 = vadd.f32 %v787, %v771
      %v789 = vadd.f32 %v788, %v774
      %v790 = vadd.f32 %v789, %v779
      %v791 = vadd.f32 %v790, %v782
      %v792 = vrot.slane %v791, 4
      %v793 = vadd.f32 %v791, %v792
      %v794 = vrot.slane %v793, 2
      %v795 = vadd.f32 %v793, %v794
      %v796 = vrot.slane %v795, 1
      %v797 = vadd.f32 %v795, %v796
      %v798 = vadd.f32 %v797, 0.0
      %v799 = vmul.f32 %v755, %v755
      %v800 = vmul.f32 %v758, %v758
      %v801 = vmul.f32 %v763, %v763
      %v802 = vmul.f32 %v766, %v766
      %v803 = vmul.f32 %v771, %v771
      %v804 = vmul.f32 %v774, %v774
      %v805 = vmul.f32 %v779, %v779
      %v806 = vmul.f32 %v782, %v782
      %v807 = vadd.f32 %v799, %v800
      %v808 = vadd.f32 %v807, %v801
      %v809 = vadd.f32 %v808, %v802
      %v810 = vadd.f32 %v809, %v803
      %v811 = vadd.f32 %v810, %v804
      %v812 = vadd.f32 %v811, %v805
      %v813 = vadd.f32 %v812, %v806
      %v814 = vrot.slane %v813, 4
      %v815 = vadd.f32 %v813, %v814
      %v816 = vrot.slane %v815, 2
      %v817 = vadd.f32 %v815, %v816
      %v818 = vrot.slane %v817, 1
      %v819 = vadd.f32 %v817, %v818
      %v820 = vadd.f32 %v819, 0.0
      %vm821 = vcmask 1040384
      %v822 = vsel %vm821, %v798, %v820
      %823 = vst [vmem:[%s146] sm:$0x3] %v822
      %p824 = scmp.lt.s32.totalorder %s13, 1
      %s825 = scalar_select %p824, %s13, 1
      %s826 = smul.addr %s825, 2
      %s827 = scalar_lea.vmem %s2, %s826
      // Predicated region
      $region29: #{basic_block1.3} parent=27 // pred_check
        %p828 = pneg %p78
      $region30: #{basic_block1.3} parent=27 // pred_check_branch
        %830 = sbr.rel (%p828) target = $region32
      $region31: #{basic_block1.3} parent=27 // pred_region
        _
      $region32: #{basic_block1.3} parent=27 // pred_fallthru
        _
    $region28: #{basic_block1.3} parent=5 // pred_fallthru
      _
    %p831 = scmp.le.s32.totalorder 2, %s8
    // Predicated region
    $region33: #{basic_block1.3} parent=5 // pred_check
      %p832 = pneg %p831
    $region34: #{basic_block1.3} parent=5 // pred_check_branch
      %834 = sbr.rel (%p832) target = $region36
    $region35: #{basic_block1.3} parent=5 // pred_region
      %s835 = ssub.s32 %s8, 2
      // Predicated region
      $region37: #{basic_block1.3} parent=35 // pred_check
        %p836 = pneg %p84
      $region38: #{basic_block1.3} parent=35 // pred_check_branch
        %838 = sbr.rel (%p836) target = $region40
      $region39: #{basic_block1.3} parent=35 // pred_region
        %p839 = scmp.lt.s32.totalorder %s14, 1
        %s840 = scalar_select %p839, %s14, 1
        %s841 = smul.addr %s840, 2
        %s842 = scalar_lea.vmem %s2, %s841
      $region40: #{basic_block1.3} parent=35 // pred_fallthru
        _
    $region36: #{basic_block1.3} parent=5 // pred_fallthru
      _
  $region6: #{basic_block1.3} parent=0 // loop_footer
    %s12 = sadd.s32 1, %s8
  $region7: #{basic_block1.3} parent=0 // loop_footer_branch
    %7 = sbr.rel target = $region3
  $region8: #{basic_block1.3} parent=0 // loop_exit
    _

// kernel: basic_block1.5
$region0: #{basic_block1.5}
  #allocation0 [shape = 'u32[]', space=smem, size = 0x4, offset = 0x4, fixed_abs, tag = 'smem constant byte address 0x4 - core index']
  #allocation1 [shape = 'u32[144,128]{1,0:T(1,128)}', space=vmem, size = 0x12000, scoped, tag = 'internal scratch']
  %s0 = inlined_call_operand.vmem [shape: bf16[8,16,128], index: 0, kind: input, shape index: {}]
  %s1 = inlined_call_operand.vmem [shape: f32[1,128], index: 1, kind: input, shape index: {}]
  %s2 = inlined_call_operand.vmem [shape: f32[1,128], index: 2, kind: input, shape index: {}]
  %s3 = inlined_call_operand.vmem [shape: f32[8,16,128], index: 3, kind: input, shape index: {}]
  %s4 = inlined_call_operand.vmem [shape: f32[8,16,128], index: 4, kind: output, shape index: {}]
  %s5 = sld [smem:[#allocation0]]
  $region49: #{basic_block1.5} parent=0
    _
  %s7 = ssub.s32 1, %s5
  %s8 = scalar_select 0, %s7, %s5
  loop: start=0, step=1, limit=4
  $region2: #{basic_block1.5} parent=0 // loop_pre_header
    _
  $region3: #{basic_block1.5} parent=0 // loop_header
    %s10 = sphi 0, %s14
    %p11 = scmp.ge.s32.totalorder %s10, 4
    %s20 = sphi 0, %s22
    %s23 = sphi 0, %s20
    %s24 = sphi 0, %s23
    %s40 = sphi 0, %s24
    %s44 = sphi 0, %s44
    %s46 = sphi 0, %s44
    %s47 = sphi 0, %s46
    %s61 = sphi 0, %s47
    %s65 = sphi 0, %s65
    %s67 = sphi 0, %s65
    %s68 = sphi 0, %s67
    %s82 = sphi 0, %s68
    %s88 = sphi 0, %s90
    %s91 = sphi 0, %s88
    %s92 = sphi 0, %s91
    %s108 = sphi 0, %s92
    %s114 = sphi 0, %s116
    %s117 = sphi 0, %s114
    %s118 = sphi 0, %s117
    %s134 = sphi 0, %s118
  $region4: #{basic_block1.5} parent=0 // loop_header_branch
    %13 = sbr.rel (%p11) target = $region8
  $region5: #{basic_block1.5} parent=0 // loop_body
    %s15 = ssub.s32 %s10, 1
    %s16 = ssub.s32 %s10, 2
    %s17 = sadd.s32 %s10, 1
    %s18 = ssub.s32 %s10, %s17
    %p19 = scmp.eq.s32.totalorder %s18, 0
    %s21 = sadd.s32 %s20, 1
    %s22 = scalar_select %p19, %s20, %s21
    %p25 = pneg %p19
    %p26 = scmp.eq.s32.totalorder %s10, 1
    %p27 = por %p25, %p26
    %p28 = scmp.ne.s32.totalorder %s20, %s23
    %p29 = scmp.eq.s32.totalorder %s10, 0
    %p30 = por %p28, %p29
    %p31 = scmp.ne.s32.totalorder %s20, %s23
    %p32 = scmp.eq.s32.totalorder %s15, 1
    %p33 = por %p31, %p32
    %p34 = scmp.ne.s32.totalorder %s23, %s24
    %p35 = scmp.eq.s32.totalorder %s15, 0
    %p36 = por %p34, %p35
    %p37 = scmp.ne.s32.totalorder %s23, %s24
    %p38 = scmp.eq.s32.totalorder %s16, 1
    %p39 = por %p37, %p38
    %p41 = scmp.ne.s32.totalorder %s24, %s40
    %p42 = scmp.eq.s32.totalorder %s16, 0
    %p43 = por %p41, %p42
    %s45 = sadd.s32 %s44, 1
    %p48 = scmp.eq.s32.totalorder %s10, 1
    %p49 = scmp.ne.s32.totalorder %s44, %s46
    %p50 = scmp.eq.s32.totalorder %s10, 0
    %p51 = por %p49, %p50
    %p52 = scmp.ne.s32.totalorder %s44, %s46
    %p53 = scmp.eq.s32.totalorder %s15, 1
    %p54 = por %p52, %p53
    %p55 = scmp.ne.s32.totalorder %s46, %s47
    %p56 = scmp.eq.s32.totalorder %s15, 0
    %p57 = por %p55, %p56
    %p58 = scmp.ne.s32.totalorder %s46, %s47
    %p59 = scmp.eq.s32.totalorder %s16, 1
    %p60 = por %p58, %p59
    %p62 = scmp.ne.s32.totalorder %s47, %s61
    %p63 = scmp.eq.s32.totalorder %s16, 0
    %p64 = por %p62, %p63
    %s66 = sadd.s32 %s65, 1
    %p69 = scmp.eq.s32.totalorder %s10, 1
    %p70 = scmp.ne.s32.totalorder %s65, %s67
    %p71 = scmp.eq.s32.totalorder %s10, 0
    %p72 = por %p70, %p71
    %p73 = scmp.ne.s32.totalorder %s65, %s67
    %p74 = scmp.eq.s32.totalorder %s15, 1
    %p75 = por %p73, %p74
    %p76 = scmp.ne.s32.totalorder %s67, %s68
    %p77 = scmp.eq.s32.totalorder %s15, 0
    %p78 = por %p76, %p77
    %p79 = scmp.ne.s32.totalorder %s67, %s68
    %p80 = scmp.eq.s32.totalorder %s16, 1
    %p81 = por %p79, %p80
    %p83 = scmp.ne.s32.totalorder %s68, %s82
    %p84 = scmp.eq.s32.totalorder %s16, 0
    %p85 = por %p83, %p84
    %s86 = ssub.s32 %s10, %s17
    %p87 = scmp.eq.s32.totalorder %s86, 0
    %s89 = sadd.s32 %s88, 1
    %s90 = scalar_select %p87, %s88, %s89
    %p93 = pneg %p87
    %p94 = scmp.eq.s32.totalorder %s10, 1
    %p95 = por %p93, %p94
    %p96 = scmp.ne.s32.totalorder %s88, %s91
    %p97 = scmp.eq.s32.totalorder %s10, 0
    %p98 = por %p96, %p97
    %p99 = scmp.ne.s32.totalorder %s88, %s91
    %p100 = scmp.eq.s32.totalorder %s15, 1
    %p101 = por %p99, %p100
    %p102 = scmp.ne.s32.totalorder %s91, %s92
    %p103 = scmp.eq.s32.totalorder %s15, 0
    %p104 = por %p102, %p103
    %p105 = scmp.ne.s32.totalorder %s91, %s92
    %p106 = scmp.eq.s32.totalorder %s16, 1
    %p107 = por %p105, %p106
    %p109 = scmp.ne.s32.totalorder %s92, %s108
    %p110 = scmp.eq.s32.totalorder %s16, 0
    %p111 = por %p109, %p110
    %s112 = ssub.s32 %s10, %s17
    %p113 = scmp.eq.s32.totalorder %s112, 0
    %s115 = sadd.s32 %s114, 1
    %s116 = scalar_select %p113, %s114, %s115
    %p119 = pneg %p113
    %p120 = scmp.eq.s32.totalorder %s10, 1
    %p121 = por %p119, %p120
    %p122 = scmp.ne.s32.totalorder %s114, %s117
    %p123 = scmp.eq.s32.totalorder %s10, 0
    %p124 = por %p122, %p123
    %p125 = scmp.ne.s32.totalorder %s114, %s117
    %p126 = scmp.eq.s32.totalorder %s15, 1
    %p127 = por %p125, %p126
    %p128 = scmp.ne.s32.totalorder %s117, %s118
    %p129 = scmp.eq.s32.totalorder %s15, 0
    %p130 = por %p128, %p129
    %p131 = scmp.ne.s32.totalorder %s117, %s118
    %p132 = scmp.eq.s32.totalorder %s16, 1
    %p133 = por %p131, %p132
    %p135 = scmp.ne.s32.totalorder %s118, %s134
    %p136 = scmp.eq.s32.totalorder %s16, 0
    %p137 = por %p135, %p136
    %p138 = scmp.le.s32.totalorder 1, %s10
    %p139 = scmp.lt.s32.totalorder %s10, 3
    %p140 = pnand %p138, %p139
    %p141 = pneg %p140
    // Predicated region
    $region9: #{basic_block1.5} parent=5 // pred_check
      _
    $region10: #{basic_block1.5} parent=5 // pred_check_branch
      %143 = sbr.rel (%p140) target = $region12
    $region11: #{basic_block1.5} parent=5 // pred_region
      %s144 = ssub.s32 %s10, 1
      // Predicated region
      $region13: #{basic_block1.5} parent=11 // pred_check
        %p145 = pneg %p57
      $region14: #{basic_block1.5} parent=11 // pred_check_branch
        %147 = sbr.rel (%p145) target = $region16
      $region15: #{basic_block1.5} parent=11 // pred_region
        _
      $region16: #{basic_block1.5} parent=11 // pred_fallthru
        _
      // Predicated region
      $region17: #{basic_block1.5} parent=11 // pred_check
        %p148 = pneg %p78
      $region18: #{basic_block1.5} parent=11 // pred_check_branch
        %150 = sbr.rel (%p148) target = $region20
      $region19: #{basic_block1.5} parent=11 // pred_region
        _
      $region20: #{basic_block1.5} parent=11 // pred_fallthru
        _
    $region12: #{basic_block1.5} parent=5 // pred_fallthru
      _
    %p151 = scmp.lt.s32.totalorder %s10, 2
    // Predicated region
    $region21: #{basic_block1.5} parent=5 // pred_check
      %p152 = pneg %p151
    $region22: #{basic_block1.5} parent=5 // pred_check_branch
      %154 = sbr.rel (%p152) target = $region24
    $region23: #{basic_block1.5} parent=5 // pred_region
      // Predicated region
      $region25: #{basic_block1.5} parent=23 // pred_check
        %p155 = pneg %p30
      $region26: #{basic_block1.5} parent=23 // pred_check_branch
        %157 = sbr.rel (%p155) target = $region28
      $region27: #{basic_block1.5} parent=23 // pred_region
        %s158 = smul.u32 4, %s10
        %p159 = scmp.lt.s32.totalorder %s158, 7
        %s160 = scalar_select %p159, %s158, 7
        %s161 = smul.addr %s160, 2
        %s162 = smul.addr %s161, 4
        %s163 = scalar_lea.vmem %s0, %s162
        %s164 = smul.u32 4, %s10
      $region28: #{basic_block1.5} parent=23 // pred_fallthru
        _
      // Predicated region
      $region29: #{basic_block1.5} parent=23 // pred_check
        %p165 = pneg %p98
      $region30: #{basic_block1.5} parent=23 // pred_check_branch
        %167 = sbr.rel (%p165) target = $region32
      $region31: #{basic_block1.5} parent=23 // pred_region
        %s168 = smul.u32 4, %s10
        %p169 = scmp.lt.s32.totalorder %s168, 7
        %s170 = scalar_select %p169, %s168, 7
        %s171 = smul.addr %s170, 2
        %s172 = smul.addr %s171, 8
        %s173 = scalar_lea.vmem %s3, %s172
        %s174 = smul.u32 4, %s10
      $region32: #{basic_block1.5} parent=23 // pred_fallthru
        _
    $region24: #{basic_block1.5} parent=5 // pred_fallthru
      _
    %p175 = scmp.le.s32.totalorder 1, %s10
    %p176 = scmp.lt.s32.totalorder %s10, 3
    %p177 = pnand %p175, %p176
    %p178 = pneg %p177
    // Predicated region
    $region33: #{basic_block1.5} parent=5 // pred_check
      _
    $region34: #{basic_block1.5} parent=5 // pred_check_branch
      %180 = sbr.rel (%p177) target = $region36
    $region35: #{basic_block1.5} parent=5 // pred_region
      %s181 = ssub.s32 %s10, 1
      %s182 = smul.u32 4, %s15
      %p183 = scmp.lt.s32.totalorder %s182, 7
      %s184 = scalar_select %p183, %s182, 7
      %s185 = smul.addr %s184, 2
      %s186 = smul.addr %s185, 4
      %s187 = scalar_lea.vmem %s0, %s186
      %p188 = pneg %p36
      %p189 = pneg %p33
      %p190 = pneg %p57
      %p191 = pneg %p54
      %p192 = pneg %p78
      %p193 = pneg %p75
      %s194 = smul.u32 4, %s15
      %p195 = scmp.lt.s32.totalorder %s194, 7
      %s196 = scalar_select %p195, %s194, 7
      %s197 = smul.addr %s196, 2
      %s198 = smul.addr %s197, 8
      %s199 = scalar_lea.vmem %s3, %s198
      %p200 = pneg %p104
      %p201 = pneg %p101
      %p202 = pneg %p130
      %p203 = pneg %p127
      %s204 = smul.u32 4, %s15
      %p205 = scmp.lt.s32.totalorder %s204, 7
      %s206 = scalar_select %p205, %s204, 7
      %s207 = smul.addr %s206, 2
      %s208 = smul.addr %s207, 8
      %s209 = scalar_lea.vmem %s4, %s208
      %s210 = smul.u32 4, %s15
      %p211 = scmp.lt.s32.totalorder %s210, 7
      %s212 = scalar_select %p211, %s210, 7
      %s213 = smul.addr %s212, 2
      %s214 = smul.addr %s213, 4
      %s215 = scalar_lea.vmem %s0, %s214
      %s216 = smul.u32 4, %s15
      %s217 = smul.u32 4, %s15
      %p218 = scmp.lt.s32.totalorder %s217, 7
      %s219 = scalar_select %p218, %s217, 7
      %s220 = smul.addr %s219, 2
      %s221 = smul.addr %s220, 8
      %s222 = scalar_lea.vmem %s3, %s221
      %s223 = smul.u32 4, %s15
      %s224 = smul.u32 4, %s15
      %p225 = scmp.lt.s32.totalorder %s224, 7
      %s226 = scalar_select %p225, %s224, 7
      %s227 = smul.addr %s226, 2
      %s228 = smul.addr %s227, 8
      %s229 = scalar_lea.vmem %s4, %s228
      %s230 = smul.u32 4, %s15
      %v231 = vld [vmem:[%s215] sm:$0xf]
      %v232 = vld [vmem:[%s215 + $0x4] sm:$0xf]
      %v233 = vld [vmem:[%s215 + $0x8] sm:$0xf]
      %v234 = vld [vmem:[%s215 + $0xc] sm:$0xf]
      %v235 = vld [vmem:[%s215 + $0x10] sm:$0xf]
      %v236 = vld [vmem:[%s215 + $0x14] sm:$0xf]
      %v237 = vld [vmem:[%s215 + $0x18] sm:$0xf]
      %v238 = vld [vmem:[%s215 + $0x1c] sm:$0xf]
      %v239 = vunpack.c.l.bf16 %v231
      %v240 = vunpack.c.l.bf16 %v232
      %v241 = vunpack.c.l.bf16 %v233
      %v242 = vunpack.c.l.bf16 %v234
      %v243 = vunpack.c.l.bf16 %v235
      %v244 = vunpack.c.l.bf16 %v236
      %v245 = vunpack.c.l.bf16 %v237
      %v246 = vunpack.c.l.bf16 %v238
      %v247 = vld [vmem:[%s1] sm:$0x1]
      %v249 = vlaneseq
      %v250 = vshrl.u32 %v249, 7
      %v251 = vsub.s32 0, %v250
      %v252 = vrot.slane %v247, %v251
      %v254 = vmul.f32 %v239, %v252
      %v255 = vmul.f32 %v240, %v252
      %v256 = vmul.f32 %v241, %v252
      %v257 = vmul.f32 %v242, %v252
      %v258 = vmul.f32 %v243, %v252
      %v259 = vmul.f32 %v244, %v252
      %v260 = vmul.f32 %v245, %v252
      %v261 = vmul.f32 %v246, %v252
      %v262 = vld [vmem:[%s2] sm:$0x1]
      %v264 = vlaneseq
      %v265 = vshrl.u32 %v264, 7
      %v266 = vsub.s32 0, %v265
      %v267 = vrot.slane %v262, %v266
      %v269 = vadd.f32 %v254, %v267
      %v270 = vadd.f32 %v255, %v267
      %v271 = vadd.f32 %v256, %v267
      %v272 = vadd.f32 %v257, %v267
      %v273 = vadd.f32 %v258, %v267
      %v274 = vadd.f32 %v259, %v267
      %v275 = vadd.f32 %v260, %v267
      %v276 = vadd.f32 %v261, %v267
      %v277 = vld [vmem:[%s222] sm:$0xff]
      %v278 = vld [vmem:[%s222 + $0x8] sm:$0xff]
      %v279 = vld [vmem:[%s222 + $0x10] sm:$0xff]
      %v280 = vld [vmem:[%s222 + $0x18] sm:$0xff]
      %v281 = vld [vmem:[%s222 + $0x20] sm:$0xff]
      %v282 = vld [vmem:[%s222 + $0x28] sm:$0xff]
      %v283 = vld [vmem:[%s222 + $0x30] sm:$0xff]
      %v284 = vld [vmem:[%s222 + $0x38] sm:$0xff]
      %v285 = vadd.f32 %v269, %v277
      %v286 = vadd.f32 %v270, %v278
      %v287 = vadd.f32 %v271, %v279
      %v288 = vadd.f32 %v272, %v280
      %v289 = vadd.f32 %v273, %v281
      %v290 = vadd.f32 %v274, %v282
      %v291 = vadd.f32 %v275, %v283
      %v292 = vadd.f32 %v276, %v284
      %v293 = vmax.f32 %v285, 0.0
      %v294 = vmax.f32 %v286, 0.0
      %v295 = vmax.f32 %v287, 0.0
      %v296 = vmax.f32 %v288, 0.0
      %v297 = vmax.f32 %v289, 0.0
      %v298 = vmax.f32 %v290, 0.0
      %v299 = vmax.f32 %v291, 0.0
      %v300 = vmax.f32 %v292, 0.0
      %301 = vst [vmem:[%s229] sm:$0xff] %v293
      %302 = vst [vmem:[%s229 + $0x8] sm:$0xff] %v294
      %303 = vst [vmem:[%s229 + $0x10] sm:$0xff] %v295
      %304 = vst [vmem:[%s229 + $0x18] sm:$0xff] %v296
      %305 = vst [vmem:[%s229 + $0x20] sm:$0xff] %v297
      %306 = vst [vmem:[%s229 + $0x28] sm:$0xff] %v298
      %307 = vst [vmem:[%s229 + $0x30] sm:$0xff] %v299
      %308 = vst [vmem:[%s229 + $0x38] sm:$0xff] %v300
      %s309 = smul.u32 4, %s15
      %p310 = scmp.lt.s32.totalorder %s309, 7
      %s311 = scalar_select %p310, %s309, 7
      %s312 = smul.addr %s311, 2
      %s313 = smul.addr %s312, 8
      %s314 = scalar_lea.vmem %s4, %s313
      // Predicated region
      $region37: #{basic_block1.5} parent=35 // pred_check
        %p315 = pneg %p127
      $region38: #{basic_block1.5} parent=35 // pred_check_branch
        %317 = sbr.rel (%p315) target = $region40
      $region39: #{basic_block1.5} parent=35 // pred_region
        %s318 = smul.u32 4, %s15
      $region40: #{basic_block1.5} parent=35 // pred_fallthru
        _
    $region36: #{basic_block1.5} parent=5 // pred_fallthru
      _
    %p319 = scmp.le.s32.totalorder 2, %s10
    // Predicated region
    $region41: #{basic_block1.5} parent=5 // pred_check
      %p320 = pneg %p319
    $region42: #{basic_block1.5} parent=5 // pred_check_branch
      %322 = sbr.rel (%p320) target = $region44
    $region43: #{basic_block1.5} parent=5 // pred_region
      %s323 = ssub.s32 %s10, 2
      // Predicated region
      $region45: #{basic_block1.5} parent=43 // pred_check
        %p324 = pneg %p133
      $region46: #{basic_block1.5} parent=43 // pred_check_branch
        %326 = sbr.rel (%p324) target = $region48
      $region47: #{basic_block1.5} parent=43 // pred_region
        %s327 = smul.u32 4, %s16
        %p328 = scmp.lt.s32.totalorder %s327, 7
        %s329 = scalar_select %p328, %s327, 7
        %s330 = smul.addr %s329, 2
        %s331 = smul.addr %s330, 8
        %s332 = scalar_lea.vmem %s4, %s331
      $region48: #{basic_block1.5} parent=43 // pred_fallthru
        _
    $region44: #{basic_block1.5} parent=5 // pred_fallthru
      _
  $region6: #{basic_block1.5} parent=0 // loop_footer
    %s14 = sadd.s32 1, %s10
  $region7: #{basic_block1.5} parent=0 // loop_footer_branch
    %9 = sbr.rel target = $region3
  $region8: #{basic_block1.5} parent=0 // loop_exit
    _

// kernel: basic_block1.4
$region0: #{basic_block1.4}
  #allocation0 [shape = 'u32[]', space=smem, size = 0x4, offset = 0x4, fixed_abs, tag = 'smem constant byte address 0x4 - core index']
  #allocation1 [shape = 'u32[144,128]{1,0:T(1,128)}', space=vmem, size = 0x12000, scoped, tag = 'internal scratch']
  #allocation2 [shape = 'bf16[4,16,384]{2,1,0:T(8,128)(2,1)}', space=vmem, size = 0xc000, scoped, tag = 'scratch operand']
  %s0 = inlined_call_operand.vmem [shape: f32[8,16,128], index: 0, kind: input, shape index: {}]
  %s1 = inlined_call_operand.vmem [shape: f32[1,128], index: 1, kind: input, shape index: {}]
  %s2 = inlined_call_operand.vmem [shape: f32[1,128], index: 2, kind: input, shape index: {}]
  %s3 = inlined_call_operand.vmem [shape: bf16[384,128], index: 3, kind: input, shape index: {}]
  %s4 = inlined_call_operand.vmem [shape: bf16[384,128], index: 4, kind: input, shape index: {}]
  %s5 = inlined_call_operand.vmem [shape: bf16[8,16,128], index: 5, kind: output, shape index: {0}]
  %s6 = inlined_call_operand.vmem [shape: f32[2,2,128], index: 6, kind: output, shape index: {1}]
  %7 = xla_tuple %s5, %s6
  %s8 = sld [smem:[#allocation0]]
  $region61: #{basic_block1.4} parent=0
    _
  %s10 = ssub.s32 1, %s8
  %s11 = scalar_select 0, %s10, %s8
  loop: start=0, step=1, limit=4
  $region2: #{basic_block1.4} parent=0 // loop_pre_header
    _
  $region3: #{basic_block1.4} parent=0 // loop_header
    %s13 = sphi 0, %s17
    %p14 = scmp.ge.s32.totalorder %s13, 4
    %s23 = sphi 0, %s25
    %s26 = sphi 0, %s23
    %s27 = sphi 0, %s26
    %s43 = sphi 0, %s27
    %s47 = sphi 0, %s47
    %s49 = sphi 0, %s47
    %s50 = sphi 0, %s49
    %s64 = sphi 0, %s50
    %s68 = sphi 0, %s68
    %s70 = sphi 0, %s68
    %s71 = sphi 0, %s70
    %s85 = sphi 0, %s71
    %s89 = sphi 0, %s89
    %s91 = sphi 0, %s89
    %s92 = sphi 0, %s91
    %s106 = sphi 0, %s92
    %s110 = sphi 0, %s110
    %s112 = sphi 0, %s110
    %s113 = sphi 0, %s112
    %s127 = sphi 0, %s113
    %s133 = sphi 0, %s135
    %s136 = sphi 0, %s133
    %s137 = sphi 0, %s136
    %s153 = sphi 0, %s137
    %s159 = sphi 0, %s161
    %s162 = sphi 0, %s159
    %s163 = sphi 0, %s162
    %s179 = sphi 0, %s163
  $region4: #{basic_block1.4} parent=0 // loop_header_branch
    %16 = sbr.rel (%p14) target = $region8
  $region5: #{basic_block1.4} parent=0 // loop_body
    %s18 = ssub.s32 %s13, 1
    %s19 = ssub.s32 %s13, 2
    %s20 = sadd.s32 %s13, 1
    %s21 = ssub.s32 %s13, %s20
    %p22 = scmp.eq.s32.totalorder %s21, 0
    %s24 = sadd.s32 %s23, 1
    %s25 = scalar_select %p22, %s23, %s24
    %p28 = pneg %p22
    %p29 = scmp.eq.s32.totalorder %s13, 1
    %p30 = por %p28, %p29
    %p31 = scmp.ne.s32.totalorder %s23, %s26
    %p32 = scmp.eq.s32.totalorder %s13, 0
    %p33 = por %p31, %p32
    %p34 = scmp.ne.s32.totalorder %s23, %s26
    %p35 = scmp.eq.s32.totalorder %s18, 1
    %p36 = por %p34, %p35
    %p37 = scmp.ne.s32.totalorder %s26, %s27
    %p38 = scmp.eq.s32.totalorder %s18, 0
    %p39 = por %p37, %p38
    %p40 = scmp.ne.s32.totalorder %s26, %s27
    %p41 = scmp.eq.s32.totalorder %s19, 1
    %p42 = por %p40, %p41
    %p44 = scmp.ne.s32.totalorder %s27, %s43
    %p45 = scmp.eq.s32.totalorder %s19, 0
    %p46 = por %p44, %p45
    %s48 = sadd.s32 %s47, 1
    %p51 = scmp.eq.s32.totalorder %s13, 1
    %p52 = scmp.ne.s32.totalorder %s47, %s49
    %p53 = scmp.eq.s32.totalorder %s13, 0
    %p54 = por %p52, %p53
    %p55 = scmp.ne.s32.totalorder %s47, %s49
    %p56 = scmp.eq.s32.totalorder %s18, 1
    %p57 = por %p55, %p56
    %p58 = scmp.ne.s32.totalorder %s49, %s50
    %p59 = scmp.eq.s32.totalorder %s18, 0
    %p60 = por %p58, %p59
    %p61 = scmp.ne.s32.totalorder %s49, %s50
    %p62 = scmp.eq.s32.totalorder %s19, 1
    %p63 = por %p61, %p62
    %p65 = scmp.ne.s32.totalorder %s50, %s64
    %p66 = scmp.eq.s32.totalorder %s19, 0
    %p67 = por %p65, %p66
    %s69 = sadd.s32 %s68, 1
    %p72 = scmp.eq.s32.totalorder %s13, 1
    %p73 = scmp.ne.s32.totalorder %s68, %s70
    %p74 = scmp.eq.s32.totalorder %s13, 0
    %p75 = por %p73, %p74
    %p76 = scmp.ne.s32.totalorder %s68, %s70
    %p77 = scmp.eq.s32.totalorder %s18, 1
    %p78 = por %p76, %p77
    %p79 = scmp.ne.s32.totalorder %s70, %s71
    %p80 = scmp.eq.s32.totalorder %s18, 0
    %p81 = por %p79, %p80
    %p82 = scmp.ne.s32.totalorder %s70, %s71
    %p83 = scmp.eq.s32.totalorder %s19, 1
    %p84 = por %p82, %p83
    %p86 = scmp.ne.s32.totalorder %s71, %s85
    %p87 = scmp.eq.s32.totalorder %s19, 0
    %p88 = por %p86, %p87
    %s90 = sadd.s32 %s89, 1
    %p93 = scmp.eq.s32.totalorder %s13, 1
    %p94 = scmp.ne.s32.totalorder %s89, %s91
    %p95 = scmp.eq.s32.totalorder %s13, 0
    %p96 = por %p94, %p95
    %p97 = scmp.ne.s32.totalorder %s89, %s91
    %p98 = scmp.eq.s32.totalorder %s18, 1
    %p99 = por %p97, %p98
    %p100 = scmp.ne.s32.totalorder %s91, %s92
    %p101 = scmp.eq.s32.totalorder %s18, 0
    %p102 = por %p100, %p101
    %p103 = scmp.ne.s32.totalorder %s91, %s92
    %p104 = scmp.eq.s32.totalorder %s19, 1
    %p105 = por %p103, %p104
    %p107 = scmp.ne.s32.totalorder %s92, %s106
    %p108 = scmp.eq.s32.totalorder %s19, 0
    %p109 = por %p107, %p108
    %s111 = sadd.s32 %s110, 1
    %p114 = scmp.eq.s32.totalorder %s13, 1
    %p115 = scmp.ne.s32.totalorder %s110, %s112
    %p116 = scmp.eq.s32.totalorder %s13, 0
    %p117 = por %p115, %p116
    %p118 = scmp.ne.s32.totalorder %s110, %s112
    %p119 = scmp.eq.s32.totalorder %s18, 1
    %p120 = por %p118, %p119
    %p121 = scmp.ne.s32.totalorder %s112, %s113
    %p122 = scmp.eq.s32.totalorder %s18, 0
    %p123 = por %p121, %p122
    %p124 = scmp.ne.s32.totalorder %s112, %s113
    %p125 = scmp.eq.s32.totalorder %s19, 1
    %p126 = por %p124, %p125
    %p128 = scmp.ne.s32.totalorder %s113, %s127
    %p129 = scmp.eq.s32.totalorder %s19, 0
    %p130 = por %p128, %p129
    %s131 = ssub.s32 %s13, %s20
    %p132 = scmp.eq.s32.totalorder %s131, 0
    %s134 = sadd.s32 %s133, 1
    %s135 = scalar_select %p132, %s133, %s134
    %p138 = pneg %p132
    %p139 = scmp.eq.s32.totalorder %s13, 1
    %p140 = por %p138, %p139
    %p141 = scmp.ne.s32.totalorder %s133, %s136
    %p142 = scmp.eq.s32.totalorder %s13, 0
    %p143 = por %p141, %p142
    %p144 = scmp.ne.s32.totalorder %s133, %s136
    %p145 = scmp.eq.s32.totalorder %s18, 1
    %p146 = por %p144, %p145
    %p147 = scmp.ne.s32.totalorder %s136, %s137
    %p148 = scmp.eq.s32.totalorder %s18, 0
    %p149 = por %p147, %p148
    %p150 = scmp.ne.s32.totalorder %s136, %s137
    %p151 = scmp.eq.s32.totalorder %s19, 1
    %p152 = por %p150, %p151
    %p154 = scmp.ne.s32.totalorder %s137, %s153
    %p155 = scmp.eq.s32.totalorder %s19, 0
    %p156 = por %p154, %p155
    %s157 = ssub.s32 %s13, %s20
    %p158 = scmp.eq.s32.totalorder %s157, 0
    %s160 = sadd.s32 %s159, 1
    %s161 = scalar_select %p158, %s159, %s160
    %p164 = pneg %p158
    %p165 = scmp.eq.s32.totalorder %s13, 1
    %p166 = por %p164, %p165
    %p167 = scmp.ne.s32.totalorder %s159, %s162
    %p168 = scmp.eq.s32.totalorder %s13, 0
    %p169 = por %p167, %p168
    %p170 = scmp.ne.s32.totalorder %s159, %s162
    %p171 = scmp.eq.s32.totalorder %s18, 1
    %p172 = por %p170, %p171
    %p173 = scmp.ne.s32.totalorder %s162, %s163
    %p174 = scmp.eq.s32.totalorder %s18, 0
    %p175 = por %p173, %p174
    %p176 = scmp.ne.s32.totalorder %s162, %s163
    %p177 = scmp.eq.s32.totalorder %s19, 1
    %p178 = por %p176, %p177
    %p180 = scmp.ne.s32.totalorder %s163, %s179
    %p181 = scmp.eq.s32.totalorder %s19, 0
    %p182 = por %p180, %p181
    %p183 = scmp.le.s32.totalorder 1, %s13
    %p184 = scmp.lt.s32.totalorder %s13, 3
    %p185 = pnand %p183, %p184
    %p186 = pneg %p185
    // Predicated region
    $region9: #{basic_block1.4} parent=5 // pred_check
      _
    $region10: #{basic_block1.4} parent=5 // pred_check_branch
      %188 = sbr.rel (%p185) target = $region12
    $region11: #{basic_block1.4} parent=5 // pred_region
      %s189 = ssub.s32 %s13, 1
      // Predicated region
      $region13: #{basic_block1.4} parent=11 // pred_check
        %p190 = pneg %p60
      $region14: #{basic_block1.4} parent=11 // pred_check_branch
        %192 = sbr.rel (%p190) target = $region16
      $region15: #{basic_block1.4} parent=11 // pred_region
        _
      $region16: #{basic_block1.4} parent=11 // pred_fallthru
        _
      // Predicated region
      $region17: #{basic_block1.4} parent=11 // pred_check
        %p193 = pneg %p81
      $region18: #{basic_block1.4} parent=11 // pred_check_branch
        %195 = sbr.rel (%p193) target = $region20
      $region19: #{basic_block1.4} parent=11 // pred_region
        _
      $region20: #{basic_block1.4} parent=11 // pred_fallthru
        _
      // Predicated region
      $region21: #{basic_block1.4} parent=11 // pred_check
        %p196 = pneg %p102
      $region22: #{basic_block1.4} parent=11 // pred_check_branch
        %198 = sbr.rel (%p196) target = $region24
      $region23: #{basic_block1.4} parent=11 // pred_region
        _
      $region24: #{basic_block1.4} parent=11 // pred_fallthru
        _
      // Predicated region
      $region25: #{basic_block1.4} parent=11 // pred_check
        %p199 = pneg %p123
      $region26: #{basic_block1.4} parent=11 // pred_check_branch
        %201 = sbr.rel (%p199) target = $region28
      $region27: #{basic_block1.4} parent=11 // pred_region
        _
      $region28: #{basic_block1.4} parent=11 // pred_fallthru
        _
    $region12: #{basic_block1.4} parent=5 // pred_fallthru
      _
    %p202 = scmp.lt.s32.totalorder %s13, 2
    // Predicated region
    $region29: #{basic_block1.4} parent=5 // pred_check
      %p203 = pneg %p202
    $region30: #{basic_block1.4} parent=5 // pred_check_branch
      %205 = sbr.rel (%p203) target = $region32
    $region31: #{basic_block1.4} parent=5 // pred_region
      // Predicated region
      $region33: #{basic_block1.4} parent=31 // pred_check
        %p206 = pneg %p33
      $region34: #{basic_block1.4} parent=31 // pred_check_branch
        %208 = sbr.rel (%p206) target = $region36
      $region35: #{basic_block1.4} parent=31 // pred_region
        %s209 = smul.u32 4, %s13
        %p210 = scmp.lt.s32.totalorder %s209, 7
        %s211 = scalar_select %p210, %s209, 7
        %s212 = smul.addr %s211, 2
        %s213 = smul.addr %s212, 8
        %s214 = scalar_lea.vmem %s0, %s213
        %s215 = smul.u32 4, %s13
      $region36: #{basic_block1.4} parent=31 // pred_fallthru
        _
    $region32: #{basic_block1.4} parent=5 // pred_fallthru
      _
    %p216 = scmp.le.s32.totalorder 1, %s13
    %p217 = scmp.lt.s32.totalorder %s13, 3
    %p218 = pnand %p216, %p217
    %p219 = pneg %p218
    // Predicated region
    $region37: #{basic_block1.4} parent=5 // pred_check
      _
    $region38: #{basic_block1.4} parent=5 // pred_check_branch
      %221 = sbr.rel (%p218) target = $region40
    $region39: #{basic_block1.4} parent=5 // pred_region
      %s222 = ssub.s32 %s13, 1
      %s223 = smul.u32 4, %s18
      %p224 = scmp.lt.s32.totalorder %s223, 7
      %s225 = scalar_select %p224, %s223, 7
      %s226 = smul.addr %s225, 2
      %s227 = smul.addr %s226, 8
      %s228 = scalar_lea.vmem %s0, %s227
      %p229 = pneg %p39
      %p230 = pneg %p36
      %p231 = pneg %p60
      %p232 = pneg %p57
      %p233 = pneg %p81
      %p234 = pneg %p78
      %p235 = pneg %p102
      %p236 = pneg %p99
      %p237 = pneg %p123
      %p238 = pneg %p120
      %p239 = pneg %p149
      %p240 = pneg %p146
      %s241 = smul.u32 4, %s18
      %p242 = scmp.lt.s32.totalorder %s241, 7
      %s243 = scalar_select %p242, %s241, 7
      %s244 = smul.addr %s243, 2
      %s245 = smul.addr %s244, 4
      %s246 = scalar_lea.vmem %s5, %s245
      %p247 = pneg %p175
      %p248 = pneg %p172
      %p249 = scmp.lt.s32.totalorder %s18, 1
      %s250 = scalar_select %p249, %s18, 1
      %s251 = smul.addr %s250, 2
      %s252 = scalar_lea.vmem %s6, %s251
      %s253 = smul.u32 4, %s18
      %p254 = scmp.lt.s32.totalorder %s253, 7
      %s255 = scalar_select %p254, %s253, 7
      %s256 = smul.addr %s255, 2
      %s257 = smul.addr %s256, 8
      %s258 = scalar_lea.vmem %s0, %s257
      %s259 = smul.u32 4, %s18
      %s260 = smul.u32 4, %s18
      %p261 = scmp.lt.s32.totalorder %s260, 7
      %s262 = scalar_select %p261, %s260, 7
      %s263 = smul.addr %s262, 2
      %s264 = smul.addr %s263, 4
      %s265 = scalar_lea.vmem %s5, %s264
      %s266 = smul.u32 4, %s18
      %p267 = scmp.lt.s32.totalorder %s18, 1
      %s268 = scalar_select %p267, %s18, 1
      %s269 = smul.addr %s268, 2
      %s270 = scalar_lea.vmem %s6, %s269
      %vm272 = vcmask 1040384
      %vm273 = vsmask.f32 256
      %vm274 = vmand %vm272, %vm273
      %v275 = vld [vmem:[#allocation2] sm:$0x1]
      %v276 = vsel %vm274, 0, %v275
      %277 = vst [vmem:[#allocation2] sm:$0x1] %v276
      %v278 = vld [vmem:[#allocation2 + $0x18] sm:$0x1]
      %v279 = vsel %vm274, 0, %v278
      %280 = vst [vmem:[#allocation2 + $0x18] sm:$0x1] %v279
      %v281 = vld [vmem:[#allocation2 + $0x30] sm:$0x1]
      %v282 = vsel %vm274, 0, %v281
      %283 = vst [vmem:[#allocation2 + $0x30] sm:$0x1] %v282
      %v284 = vld [vmem:[#allocation2 + $0x48] sm:$0x1]
      %v285 = vsel %vm274, 0, %v284
      %286 = vst [vmem:[#allocation2 + $0x48] sm:$0x1] %v285
      %vm287 = vcmask 1043459
      %vm288 = vsmask.f32 7950
      %vm289 = vmand %vm287, %vm288
      %v290 = vld [vmem:[#allocation2 + $0x14] sm:$0x8]
      %v291 = vsel %vm289, 0, %v290
      %292 = vst [vmem:[#allocation2 + $0x14] sm:$0x8] %v291
      %v293 = vld [vmem:[#allocation2 + $0x2c] sm:$0x8]
      %v294 = vsel %vm289, 0, %v293
      %295 = vst [vmem:[#allocation2 + $0x2c] sm:$0x8] %v294
      %v296 = vld [vmem:[#allocation2 + $0x44] sm:$0x8]
      %v297 = vsel %vm289, 0, %v296
      %298 = vst [vmem:[#allocation2 + $0x44] sm:$0x8] %v297
      %v299 = vld [vmem:[#allocation2 + $0x5c] sm:$0x8]
      %v300 = vsel %vm289, 0, %v299
      %301 = vst [vmem:[#allocation2 + $0x5c] sm:$0x8] %v300
      %v302 = vld [vmem:[%s1] sm:$0x1]
      %v303 = vld [vmem:[%s2] sm:$0x1]
      %v304 = vld [vmem:[%s258] sm:$0xff]
      %v305 = vld [vmem:[%s258 + $0x8] sm:$0xff]
      %v306 = vld [vmem:[%s258 + $0x10] sm:$0xff]
      %v307 = vld [vmem:[%s258 + $0x18] sm:$0xff]
      %v308 = vld [vmem:[%s258 + $0x20] sm:$0xff]
      %v309 = vld [vmem:[%s258 + $0x28] sm:$0xff]
      %v310 = vld [vmem:[%s258 + $0x30] sm:$0xff]
      %v311 = vld [vmem:[%s258 + $0x38] sm:$0xff]
      %v312 = vpack.c.bf16 %v305, %v304
      %v313 = vpack.c.bf16 %v307, %v306
      %v314 = vpack.c.bf16 %v309, %v308
      %v315 = vpack.c.bf16 %v311, %v310
      %v320 = vunpack.c.l.b16 %v312
      %v321 = vunpack.c.h.b16 %v312
      %v322 = vunpack.c.l.b16 %v313
      %v323 = vunpack.c.h.b16 %v313
      %v324 = vunpack.c.l.b16 %v314
      %v325 = vunpack.c.h.b16 %v314
      %v326 = vunpack.c.l.b16 %v315
      %v327 = vunpack.c.h.b16 %v315
      %v328 = vpack.c.b16 %v320, %v320
      %v329 = vpack.c.b16 %v321, %v321
      %v330 = vpack.c.b16 %v322, %v322
      %v331 = vpack.c.b16 %v323, %v323
      %v332 = vpack.c.b16 %v324, %v324
      %v333 = vpack.c.b16 %v325, %v325
      %v334 = vpack.c.b16 %v326, %v326
      %v335 = vpack.c.b16 %v327, %v327
      %vm336 = vsmask.f32 4368
      %vm337 = vmor %vm273, %vm336
      %v339 = vshrl.u32 %v328, 16
      %v341 = vrot.slane %v339, 7
      %v342 = vshll.u32 %v328, 16
      %v344 = vor.u32 %v341, %v342
      %v345 = vrot.slane %v341, 4
      %v347 = vshrl.u32 %v329, 16
      %v349 = vrot.slane %v347, 7
      %v350 = vshll.u32 %v329, 16
      %v352 = vor.u32 %v349, %v350
      %v353 = vsel %vm337, %v345, %v352
      %v355 = vshrl.u32 %v330, 16
      %v357 = vrot.slane %v355, 7
      %v358 = vshll.u32 %v330, 16
      %v360 = vor.u32 %v357, %v358
      %v361 = vrot.slane %v357, 4
      %v363 = vshrl.u32 %v331, 16
      %v365 = vrot.slane %v363, 7
      %v366 = vshll.u32 %v331, 16
      %v368 = vor.u32 %v365, %v366
      %v369 = vsel %vm337, %v361, %v368
      %v371 = vshrl.u32 %v332, 16
      %v373 = vrot.slane %v371, 7
      %v374 = vshll.u32 %v332, 16
      %v376 = vor.u32 %v373, %v374
      %v377 = vrot.slane %v373, 4
      %v379 = vshrl.u32 %v333, 16
      %v381 = vrot.slane %v379, 7
      %v382 = vshll.u32 %v333, 16
      %v384 = vor.u32 %v381, %v382
      %v385 = vsel %vm337, %v377, %v384
      %v387 = vshrl.u32 %v334, 16
      %v389 = vrot.slane %v387, 7
      %v390 = vshll.u32 %v334, 16
      %v392 = vor.u32 %v389, %v390
      %v393 = vrot.slane %v389, 4
      %v395 = vshrl.u32 %v335, 16
      %v397 = vrot.slane %v395, 7
      %v398 = vshll.u32 %v335, 16
      %v400 = vor.u32 %v397, %v398
      %v401 = vsel %vm337, %v393, %v400
      %vm410 = vcmask 1043456
      %vm411 = vsmask.f32 7938
      %vm412 = vmand %vm410, %vm411
      %v413 = vld [vmem:[#allocation2] sm:$0xf]
      %v414 = vsel %vm412, %v344, %v413
      %415 = vst [vmem:[#allocation2] sm:$0xf] %v414
      %416 = vst [vmem:[#allocation2 + $0xc] sm:$0xf] %v353
      %v417 = vld [vmem:[#allocation2 + $0x18] sm:$0xf]
      %v418 = vsel %vm412, %v360, %v417
      %419 = vst [vmem:[#allocation2 + $0x18] sm:$0xf] %v418
      %420 = vst [vmem:[#allocation2 + $0x24] sm:$0xf] %v369
      %v421 = vld [vmem:[#allocation2 + $0x30] sm:$0xf]
      %v422 = vsel %vm412, %v376, %v421
      %423 = vst [vmem:[#allocation2 + $0x30] sm:$0xf] %v422
      %424 = vst [vmem:[#allocation2 + $0x3c] sm:$0xf] %v385
      %v425 = vld [vmem:[#allocation2 + $0x48] sm:$0xf]
      %v426 = vsel %vm412, %v392, %v425
      %427 = vst [vmem:[#allocation2 + $0x48] sm:$0xf] %v426
      %428 = vst [vmem:[#allocation2 + $0x54] sm:$0xf] %v401
      %437 = vst [vmem:[#allocation2 + $0x4] sm:$0xf] %v328
      %438 = vst [vmem:[#allocation2 + $0x10] sm:$0xf] %v329
      %439 = vst [vmem:[#allocation2 + $0x1c] sm:$0xf] %v330
      %440 = vst [vmem:[#allocation2 + $0x28] sm:$0xf] %v331
      %441 = vst [vmem:[#allocation2 + $0x34] sm:$0xf] %v332
      %442 = vst [vmem:[#allocation2 + $0x40] sm:$0xf] %v333
      %443 = vst [vmem:[#allocation2 + $0x4c] sm:$0xf] %v334
      %444 = vst [vmem:[#allocation2 + $0x58] sm:$0xf] %v335
      %vm445 = vsmask.f32 3328
      %vm446 = vsmask.f32 7440
      %vm447 = vmor %vm445, %vm446
      %v448 = vrot.slane %v339, 4
      %v449 = vrot.slane %v342, 5
      %v450 = vor.u32 %v448, %v449
      %v451 = vrot.slane %v450, 4
      %v452 = vrot.slane %v350, 5
      %v453 = vsel %vm447, %v451, %v452
      %v454 = vrot.slane %v347, 4
      %v455 = vor.u32 %v454, %v452
      %v456 = vrot.slane %v455, 4
      %v457 = vrot.slane %v355, 4
      %v458 = vrot.slane %v358, 5
      %v459 = vor.u32 %v457, %v458
      %v460 = vrot.slane %v459, 4
      %v461 = vrot.slane %v366, 5
      %v462 = vsel %vm447, %v460, %v461
      %v463 = vrot.slane %v363, 4
      %v464 = vor.u32 %v463, %v461
      %v465 = vrot.slane %v464, 4
      %v466 = vrot.slane %v371, 4
      %v467 = vrot.slane %v374, 5
      %v468 = vor.u32 %v466, %v467
      %v469 = vrot.slane %v468, 4
      %v470 = vrot.slane %v382, 5
      %v471 = vsel %vm447, %v469, %v470
      %v472 = vrot.slane %v379, 4
      %v473 = vor.u32 %v472, %v470
      %v474 = vrot.slane %v473, 4
      %v475 = vrot.slane %v387, 4
      %v476 = vrot.slane %v390, 5
      %v477 = vor.u32 %v475, %v476
      %v478 = vrot.slane %v477, 4
      %v479 = vrot.slane %v398, 5
      %v480 = vsel %vm447, %v478, %v479
      %v481 = vrot.slane %v395, 4
      %v482 = vor.u32 %v481, %v479
      %v483 = vrot.slane %v482, 4
      %492 = vst [vmem:[#allocation2 + $0x8] sm:$0xf] %v453
      %vm493 = vmand %vm410, %vm445
      %v494 = vld [vmem:[#allocation2 + $0x14] sm:$0xf]
      %v495 = vsel %vm493, %v456, %v494
      %496 = vst [vmem:[#allocation2 + $0x14] sm:$0xf] %v495
      %497 = vst [vmem:[#allocation2 + $0x20] sm:$0xf] %v462
      %v498 = vld [vmem:[#allocation2 + $0x2c] sm:$0xf]
      %v499 = vsel %vm493, %v465, %v498
      %500 = vst [vmem:[#allocation2 + $0x2c] sm:$0xf] %v499
      %501 = vst [vmem:[#allocation2 + $0x38] sm:$0xf] %v471
      %v502 = vld [vmem:[#allocation2 + $0x44] sm:$0xf]
      %v503 = vsel %vm493, %v474, %v502
      %504 = vst [vmem:[#allocation2 + $0x44] sm:$0xf] %v503
      %505 = vst [vmem:[#allocation2 + $0x50] sm:$0xf] %v480
      %v506 = vld [vmem:[#allocation2 + $0x5c] sm:$0xf]
      %v507 = vsel %vm493, %v483, %v506
      %508 = vst [vmem:[#allocation2 + $0x5c] sm:$0xf] %v507
      %v509 = vld [vmem:[#allocation2] sm:$0xff]
      %v510 = vld [vmem:[#allocation2 + $0x8] sm:$0xf]
      %v511 = vld [vmem:[#allocation2 + $0xc] sm:$0xff]
      %v512 = vld [vmem:[#allocation2 + $0x14] sm:$0xf]
      %v513 = vld [vmem:[#allocation2 + $0x18] sm:$0xff]
      %v514 = vld [vmem:[#allocation2 + $0x20] sm:$0xf]
      %v515 = vld [vmem:[#allocation2 + $0x24] sm:$0xff]
      %v516 = vld [vmem:[#allocation2 + $0x2c] sm:$0xf]
      %v517 = vld [vmem:[#allocation2 + $0x30] sm:$0xff]
      %v518 = vld [vmem:[#allocation2 + $0x38] sm:$0xf]
      %v519 = vld [vmem:[#allocation2 + $0x3c] sm:$0xff]
      %v520 = vld [vmem:[#allocation2 + $0x44] sm:$0xf]
      %v521 = vld [vmem:[#allocation2 + $0x48] sm:$0xff]
      %v522 = vld [vmem:[#allocation2 + $0x50] sm:$0xf]
      %v523 = vld [vmem:[#allocation2 + $0x54] sm:$0xff]
      %v524 = vld [vmem:[#allocation2 + $0x5c] sm:$0xf]
      %v525 = vld [vmem:[%s3] sm:$0xf]
      %v526 = vld [vmem:[%s3 + $0x4] sm:$0xf]
      %v527 = vld [vmem:[%s3 + $0x8] sm:$0xf]
      %v528 = vld [vmem:[%s3 + $0xc] sm:$0xf]
      %v529 = vld [vmem:[%s3 + $0x10] sm:$0xf]
      %v530 = vld [vmem:[%s3 + $0x14] sm:$0xf]
      %v531 = vld [vmem:[%s3 + $0x18] sm:$0xf]
      %v532 = vld [vmem:[%s3 + $0x1c] sm:$0xf]
      %v533 = vld [vmem:[%s3 + $0x20] sm:$0xf]
      %v534 = vld [vmem:[%s3 + $0x24] sm:$0xf]
      %v535 = vld [vmem:[%s3 + $0x28] sm:$0xf]
      %v536 = vld [vmem:[%s3 + $0x2c] sm:$0xf]
      %v537 = vld [vmem:[%s3 + $0x30] sm:$0xf]
      %v538 = vld [vmem:[%s3 + $0x34] sm:$0xf]
      %v539 = vld [vmem:[%s3 + $0x38] sm:$0xf]
      %v540 = vld [vmem:[%s3 + $0x3c] sm:$0xf]
      %v541 = vld [vmem:[%s3 + $0x40] sm:$0xf]
      %v542 = vld [vmem:[%s3 + $0x44] sm:$0xf]
      %v543 = vld [vmem:[%s3 + $0x48] sm:$0xf]
      %v544 = vld [vmem:[%s3 + $0x4c] sm:$0xf]
      %v545 = vld [vmem:[%s3 + $0x50] sm:$0xf]
      %v546 = vld [vmem:[%s3 + $0x54] sm:$0xf]
      %v547 = vld [vmem:[%s3 + $0x58] sm:$0xf]
      %v548 = vld [vmem:[%s3 + $0x5c] sm:$0xf]
      %v549 = vld [vmem:[%s3 + $0x60] sm:$0xf]
      %v550 = vld [vmem:[%s3 + $0x64] sm:$0xf]
      %v551 = vld [vmem:[%s3 + $0x68] sm:$0xf]
      %v552 = vld [vmem:[%s3 + $0x6c] sm:$0xf]
      %v553 = vld [vmem:[%s3 + $0x70] sm:$0xf]
      %v554 = vld [vmem:[%s3 + $0x74] sm:$0xf]
      %v555 = vld [vmem:[%s3 + $0x78] sm:$0xf]
      %v556 = vld [vmem:[%s3 + $0x7c] sm:$0xf]
      %v557 = vld [vmem:[%s3 + $0x80] sm:$0xf]
      %v558 = vld [vmem:[%s3 + $0x84] sm:$0xf]
      %v559 = vld [vmem:[%s3 + $0x88] sm:$0xf]
      %v560 = vld [vmem:[%s3 + $0x8c] sm:$0xf]
      %v561 = vld [vmem:[%s3 + $0x90] sm:$0xf]
      %v562 = vld [vmem:[%s3 + $0x94] sm:$0xf]
      %v563 = vld [vmem:[%s3 + $0x98] sm:$0xf]
      %v564 = vld [vmem:[%s3 + $0x9c] sm:$0xf]
      %v565 = vld [vmem:[%s3 + $0xa0] sm:$0xf]
      %v566 = vld [vmem:[%s3 + $0xa4] sm:$0xf]
      %v567 = vld [vmem:[%s3 + $0xa8] sm:$0xf]
      %v568 = vld [vmem:[%s3 + $0xac] sm:$0xf]
      %v569 = vld [vmem:[%s3 + $0xb0] sm:$0xf]
      %v570 = vld [vmem:[%s3 + $0xb4] sm:$0xf]
      %v571 = vld [vmem:[%s3 + $0xb8] sm:$0xf]
      %v572 = vld [vmem:[%s3 + $0xbc] sm:$0xf]
      %v589 = vunpack.c.l.b16 %v509
      %v590 = vunpack.c.h.b16 %v509
      %v591 = vunpack.c.l.b16 %v510
      %v592 = vunpack.c.l.b16 %v511
      %v593 = vunpack.c.h.b16 %v511
      %v594 = vunpack.c.l.b16 %v512
      %v595 = vunpack.c.l.b16 %v513
      %v596 = vunpack.c.h.b16 %v513
      %v597 = vunpack.c.l.b16 %v514
      %v598 = vunpack.c.l.b16 %v515
      %v599 = vunpack.c.h.b16 %v515
      %v600 = vunpack.c.l.b16 %v516
      %v601 = vunpack.c.l.b16 %v517
      %v602 = vunpack.c.h.b16 %v517
      %v603 = vunpack.c.l.b16 %v518
      %v604 = vunpack.c.l.b16 %v519
      %v605 = vunpack.c.h.b16 %v519
      %v606 = vunpack.c.l.b16 %v520
      %v607 = vunpack.c.l.b16 %v521
      %v608 = vunpack.c.h.b16 %v521
      %v609 = vunpack.c.l.b16 %v522
      %v610 = vunpack.c.l.b16 %v523
      %v611 = vunpack.c.h.b16 %v523
      %v612 = vunpack.c.l.b16 %v524
      %v613 = vpack.c.b16 %v592, %v589
      %v614 = vpack.c.b16 %v593, %v590
      %v615 = vpack.c.b16 %v594, %v591
      %v616 = vpack.c.b16 %v598, %v595
      %v617 = vpack.c.b16 %v599, %v596
      %v618 = vpack.c.b16 %v600, %v597
      %v619 = vpack.c.b16 %v604, %v601
      %v620 = vpack.c.b16 %v605, %v602
      %v621 = vpack.c.b16 %v606, %v603
      %v622 = vpack.c.b16 %v610, %v607
      %v623 = vpack.c.b16 %v611, %v608
      %v624 = vpack.c.b16 %v612, %v609
      %v685 = vunpack.c.l.b16 %v525
      %v686 = vunpack.c.l.b16 %v526
      %v687 = vunpack.c.l.b16 %v527
      %v688 = vunpack.c.l.b16 %v528
      %v689 = vunpack.c.l.b16 %v529
      %v690 = vunpack.c.l.b16 %v530
      %v691 = vunpack.c.l.b16 %v531
      %v692 = vunpack.c.l.b16 %v532
      %v693 = vunpack.c.l.b16 %v533
      %v694 = vunpack.c.l.b16 %v534
      %v695 = vunpack.c.l.b16 %v535
      %v696 = vunpack.c.l.b16 %v536
      %v697 = vunpack.c.l.b16 %v537
      %v698 = vunpack.c.l.b16 %v538
      %v699 = vunpack.c.l.b16 %v539
      %v700 = vunpack.c.l.b16 %v540
      %v701 = vunpack.c.l.b16 %v541
      %v702 = vunpack.c.l.b16 %v542
      %v703 = vunpack.c.l.b16 %v543
      %v704 = vunpack.c.l.b16 %v544
      %v705 = vunpack.c.l.b16 %v545
      %v706 = vunpack.c.l.b16 %v546
      %v707 = vunpack.c.l.b16 %v547
      %v708 = vunpack.c.l.b16 %v548
      %v709 = vunpack.c.l.b16 %v549
      %v710 = vunpack.c.l.b16 %v550
      %v711 = vunpack.c.l.b16 %v551
      %v712 = vunpack.c.l.b16 %v552
      %v713 = vunpack.c.l.b16 %v553
      %v714 = vunpack.c.l.b16 %v554
      %v715 = vunpack.c.l.b16 %v555
      %v716 = vunpack.c.l.b16 %v556
      %v717 = vunpack.c.l.b16 %v557
      %v718 = vunpack.c.l.b16 %v558
      %v719 = vunpack.c.l.b16 %v559
      %v720 = vunpack.c.l.b16 %v560
      %v721 = vunpack.c.l.b16 %v561
      %v722 = vunpack.c.l.b16 %v562
      %v723 = vunpack.c.l.b16 %v563
      %v724 = vunpack.c.l.b16 %v564
      %v725 = vunpack.c.l.b16 %v565
      %v726 = vunpack.c.l.b16 %v566
      %v727 = vunpack.c.l.b16 %v567
      %v728 = vunpack.c.l.b16 %v568
      %v729 = vunpack.c.l.b16 %v569
      %v730 = vunpack.c.l.b16 %v570
      %v731 = vunpack.c.l.b16 %v571
      %v732 = vunpack.c.l.b16 %v572
      %v733 = vpack.c.b16 %v686, %v685
      %v734 = vpack.c.b16 %v688, %v687
      %v735 = vpack.c.b16 %v690, %v689
      %v736 = vpack.c.b16 %v692, %v691
      %v737 = vpack.c.b16 %v694, %v693
      %v738 = vpack.c.b16 %v696, %v695
      %v739 = vpack.c.b16 %v698, %v697
      %v740 = vpack.c.b16 %v700, %v699
      %v741 = vpack.c.b16 %v702, %v701
      %v742 = vpack.c.b16 %v704, %v703
      %v743 = vpack.c.b16 %v706, %v705
      %v744 = vpack.c.b16 %v708, %v707
      %v745 = vpack.c.b16 %v710, %v709
      %v746 = vpack.c.b16 %v712, %v711
      %v747 = vpack.c.b16 %v714, %v713
      %v748 = vpack.c.b16 %v716, %v715
      %v749 = vpack.c.b16 %v718, %v717
      %v750 = vpack.c.b16 %v720, %v719
      %v751 = vpack.c.b16 %v722, %v721
      %v752 = vpack.c.b16 %v724, %v723
      %v753 = vpack.c.b16 %v726, %v725
      %v754 = vpack.c.b16 %v728, %v727
      %v755 = vpack.c.b16 %v730, %v729
      %v756 = vpack.c.b16 %v732, %v731
      %781 = vmatprep.subr.bf16.mxu0 0
      %782 = vmatpush1.bf16.msra.mxu0 %v740
      %783 = vmatprep.subr.bf16.mxu0 0
      %784 = vmatpush1.bf16.msra.mxu0 %v739
      %785 = vmatprep.subr.bf16.mxu0 0
      %786 = vmatpush1.bf16.msra.mxu0 %v738
      %787 = vmatprep.subr.bf16.mxu0 0
      %788 = vmatpush1.bf16.msra.mxu0 %v737
      %789 = vmatprep.subr.bf16.mxu0 0
      %790 = vmatpush1.bf16.msra.mxu0 %v736
      %791 = vmatprep.subr.bf16.mxu0 0
      %792 = vmatpush1.bf16.msra.mxu0 %v735
      %793 = vmatprep.subr.bf16.mxu0 0
      %794 = vmatpush1.bf16.msra.mxu0 %v734
      %795 = vmatprep.subr.bf16.mxu0 0
      %796 = vmatpush1.bf16.msra.mxu0 %v733
      %797 = vmatprep.subr.bf16.mxu0 0
      %798 = vmatpush2.bf16.msra.mxu0 %v748
      %799 = vmatprep.subr.bf16.mxu0 0
      %800 = vmatpush2.bf16.msra.mxu0 %v747
      %801 = vmatprep.subr.bf16.mxu0 0
      %802 = vmatpush2.bf16.msra.mxu0 %v746
      %803 = vmatprep.subr.bf16.mxu0 0
      %804 = vmatpush2.bf16.msra.mxu0 %v745
      %805 = vmatprep.subr.bf16.mxu0 0
      %806 = vmatpush2.bf16.msra.mxu0 %v744
      %807 = vmatprep.subr.bf16.mxu0 0
      %808 = vmatpush2.bf16.msra.mxu0 %v743
      %809 = vmatprep.subr.bf16.mxu0 0
      %810 = vmatpush2.bf16.msra.mxu0 %v742
      %811 = vmatprep.subr.bf16.mxu0 0
      %812 = vmatpush2.bf16.msra.mxu0 %v741
      %813 = vmatprep.mubr.bf16.mxu0 %v614
      %814 = vmatmul.mubr.bf16.gmra.mxu0 %v613
      %v815 = vpop.f32.mrf.mxu0
      %v816 = vadd.f32 0.0, %v815
      %v817 = vpop.f32.mrf.mxu0
      %v818 = vpop.f32.mrf.mxu0
      %v819 = vadd.f32 0.0, %v818
      %v820 = vpop.f32.mrf.mxu0
      %821 = vmatprep.mubr.bf16.mxu0 %v617
      %822 = vmatmul.mubr.bf16.gmra.mxu0 %v616
      %v823 = vpop.f32.mrf.mxu0
      %v824 = vadd.f32 0.0, %v823
      %v825 = vpop.f32.mrf.mxu0
      %v826 = vpop.f32.mrf.mxu0
      %v827 = vadd.f32 0.0, %v826
      %v828 = vpop.f32.mrf.mxu0
      %829 = vmatprep.mubr.bf16.mxu0 %v620
      %830 = vmatmul.mubr.bf16.gmra.mxu0 %v619
      %v831 = vpop.f32.mrf.mxu0
      %v832 = vadd.f32 0.0, %v831
      %v833 = vpop.f32.mrf.mxu0
      %v834 = vpop.f32.mrf.mxu0
      %v835 = vadd.f32 0.0, %v834
      %v836 = vpop.f32.mrf.mxu0
      %837 = vmatprep.mubr.bf16.mxu0 %v623
      %838 = vmatmul.mubr.bf16.gmra.mxu0 %v622
      %v839 = vpop.f32.mrf.mxu0
      %v840 = vadd.f32 0.0, %v839
      %v841 = vpop.f32.mrf.mxu0
      %v842 = vpop.f32.mrf.mxu0
      %v843 = vadd.f32 0.0, %v842
      %v844 = vpop.f32.mrf.mxu0
      %845 = vdwg.mxu0
      %846 = vmatprep.subr.bf16.mxu0 0
      %847 = vmatpush1.bf16.msra.mxu0 %v756
      %848 = vmatprep.subr.bf16.mxu0 0
      %849 = vmatpush1.bf16.msra.mxu0 %v755
      %850 = vmatprep.subr.bf16.mxu0 0
      %851 = vmatpush1.bf16.msra.mxu0 %v754
      %852 = vmatprep.subr.bf16.mxu0 0
      %853 = vmatpush1.bf16.msra.mxu0 %v753
      %854 = vmatprep.subr.bf16.mxu0 0
      %855 = vmatpush1.bf16.msra.mxu0 %v752
      %856 = vmatprep.subr.bf16.mxu0 0
      %857 = vmatpush1.bf16.msra.mxu0 %v751
      %858 = vmatprep.subr.bf16.mxu0 0
      %859 = vmatpush1.bf16.msra.mxu0 %v750
      %860 = vmatprep.subr.bf16.mxu0 0
      %861 = vmatpush1.bf16.msra.mxu0 %v749
      %862 = vmatprep.subr.bf16.mxu0 0
      %863 = vmatpush2.bf16.msra.mxu0 0
      %864 = vmatprep.subr.bf16.mxu0 0
      %865 = vmatpush2.bf16.msra.mxu0 0
      %866 = vmatprep.subr.bf16.mxu0 0
      %867 = vmatpush2.bf16.msra.mxu0 0
      %868 = vmatprep.subr.bf16.mxu0 0
      %869 = vmatpush2.bf16.msra.mxu0 0
      %870 = vmatprep.subr.bf16.mxu0 0
      %871 = vmatpush2.bf16.msra.mxu0 0
      %872 = vmatprep.subr.bf16.mxu0 0
      %873 = vmatpush2.bf16.msra.mxu0 0
      %874 = vmatprep.subr.bf16.mxu0 0
      %875 = vmatpush2.bf16.msra.mxu0 0
      %876 = vmatprep.subr.bf16.mxu0 0
      %877 = vmatpush2.bf16.msra.mxu0 0
      %878 = vmatprep.mubr.bf16.mxu0 0
      %879 = vmatmul.mubr.bf16.gmra.mxu0 %v615
      %v880 = vpop.f32.mrf.mxu0
      %v881 = vadd.f32 %v816, %v880
      %v882 = vpop.f32.mrf.mxu0
      %v883 = vpop.f32.mrf.mxu0
      %v884 = vadd.f32 %v819, %v883
      %v885 = vpop.f32.mrf.mxu0
      %886 = vmatprep.mubr.bf16.mxu0 0
      %887 = vmatmul.mubr.bf16.gmra.mxu0 %v618
      %v888 = vpop.f32.mrf.mxu0
      %v889 = vadd.f32 %v824, %v888
      %v890 = vpop.f32.mrf.mxu0
      %v891 = vpop.f32.mrf.mxu0
      %v892 = vadd.f32 %v827, %v891
      %v893 = vpop.f32.mrf.mxu0
      %894 = vmatprep.mubr.bf16.mxu0 0
      %895 = vmatmul.mubr.bf16.gmra.mxu0 %v621
      %v896 = vpop.f32.mrf.mxu0
      %v897 = vadd.f32 %v832, %v896
      %v898 = vpop.f32.mrf.mxu0
      %v899 = vpop.f32.mrf.mxu0
      %v900 = vadd.f32 %v835, %v899
      %v901 = vpop.f32.mrf.mxu0
      %902 = vmatprep.mubr.bf16.mxu0 0
      %903 = vmatmul.mubr.bf16.gmra.mxu0 %v624
      %v904 = vpop.f32.mrf.mxu0
      %v905 = vadd.f32 %v840, %v904
      %v906 = vpop.f32.mrf.mxu0
      %v907 = vpop.f32.mrf.mxu0
      %v908 = vadd.f32 %v843, %v907
      %v909 = vpop.f32.mrf.mxu0
      %910 = vdwg.mxu0
      %v912 = vlaneseq
      %v913 = vshrl.u32 %v912, 7
      %v914 = vsub.s32 0, %v913
      %v915 = vrot.slane %v302, %v914
      %v917 = vmul.f32 %v881, %v915
      %v918 = vmul.f32 %v884, %v915
      %v919 = vmul.f32 %v889, %v915
      %v920 = vmul.f32 %v892, %v915
      %v921 = vmul.f32 %v897, %v915
      %v922 = vmul.f32 %v900, %v915
      %v923 = vmul.f32 %v905, %v915
      %v924 = vmul.f32 %v908, %v915
      %v926 = vlaneseq
      %v927 = vshrl.u32 %v926, 7
      %v928 = vsub.s32 0, %v927
      %v929 = vrot.slane %v303, %v928
      %v931 = vadd.f32 %v917, %v929
      %v932 = vadd.f32 %v918, %v929
      %v933 = vadd.f32 %v919, %v929
      %v934 = vadd.f32 %v920, %v929
      %v935 = vadd.f32 %v921, %v929
      %v936 = vadd.f32 %v922, %v929
      %v937 = vadd.f32 %v923, %v929
      %v938 = vadd.f32 %v924, %v929
      %v939 = vmax.f32 %v931, 0.0
      %v940 = vmax.f32 %v932, 0.0
      %v941 = vmax.f32 %v933, 0.0
      %v942 = vmax.f32 %v934, 0.0
      %v943 = vmax.f32 %v935, 0.0
      %v944 = vmax.f32 %v936, 0.0
      %v945 = vmax.f32 %v937, 0.0
      %v946 = vmax.f32 %v938, 0.0
      %v947 = vpack.c.bf16 %v940, %v939
      %v948 = vpack.c.bf16 %v942, %v941
      %v949 = vpack.c.bf16 %v944, %v943
      %v950 = vpack.c.bf16 %v946, %v945
      %v955 = vunpack.c.l.b16 %v947
      %v956 = vunpack.c.h.b16 %v947
      %v957 = vunpack.c.l.b16 %v948
      %v958 = vunpack.c.h.b16 %v948
      %v959 = vunpack.c.l.b16 %v949
      %v960 = vunpack.c.h.b16 %v949
      %v961 = vunpack.c.l.b16 %v950
      %v962 = vunpack.c.h.b16 %v950
      %v963 = vpack.c.b16 %v955, %v955
      %v964 = vpack.c.b16 %v956, %v956
      %v965 = vpack.c.b16 %v957, %v957
      %v966 = vpack.c.b16 %v958, %v958
      %v967 = vpack.c.b16 %v959, %v959
      %v968 = vpack.c.b16 %v960, %v960
      %v969 = vpack.c.b16 %v961, %v961
      %v970 = vpack.c.b16 %v962, %v962
      %v972 = vshrl.u32 %v963, 16
      %v974 = vrot.slane %v972, 7
      %v975 = vshll.u32 %v963, 16
      %v977 = vor.u32 %v974, %v975
      %v978 = vrot.slane %v974, 4
      %v980 = vshrl.u32 %v964, 16
      %v982 = vrot.slane %v980, 7
      %v983 = vshll.u32 %v964, 16
      %v985 = vor.u32 %v982, %v983
      %v986 = vsel %vm337, %v978, %v985
      %v988 = vshrl.u32 %v965, 16
      %v990 = vrot.slane %v988, 7
      %v991 = vshll.u32 %v965, 16
      %v993 = vor.u32 %v990, %v991
      %v994 = vrot.slane %v990, 4
      %v996 = vshrl.u32 %v966, 16
      %v998 = vrot.slane %v996, 7
      %v999 = vshll.u32 %v966, 16
      %v1001 = vor.u32 %v998, %v999
      %v1002 = vsel %vm337, %v994, %v1001
      %v1004 = vshrl.u32 %v967, 16
      %v1006 = vrot.slane %v1004, 7
      %v1007 = vshll.u32 %v967, 16
      %v1009 = vor.u32 %v1006, %v1007
      %v1010 = vrot.slane %v1006, 4
      %v1012 = vshrl.u32 %v968, 16
      %v1014 = vrot.slane %v1012, 7
      %v1015 = vshll.u32 %v968, 16
      %v1017 = vor.u32 %v1014, %v1015
      %v1018 = vsel %vm337, %v1010, %v1017
      %v1020 = vshrl.u32 %v969, 16
      %v1022 = vrot.slane %v1020, 7
      %v1023 = vshll.u32 %v969, 16
      %v1025 = vor.u32 %v1022, %v1023
      %v1026 = vrot.slane %v1022, 4
      %v1028 = vshrl.u32 %v970, 16
      %v1030 = vrot.slane %v1028, 7
      %v1031 = vshll.u32 %v970, 16
      %v1033 = vor.u32 %v1030, %v1031
      %v1034 = vsel %vm337, %v1026, %v1033
      %v1043 = vld [vmem:[#allocation2] sm:$0xf]
      %v1044 = vsel %vm412, %v977, %v1043
      %1045 = vst [vmem:[#allocation2] sm:$0xf] %v1044
      %1046 = vst [vmem:[#allocation2 + $0xc] sm:$0xf] %v986
      %v1047 = vld [vmem:[#allocation2 + $0x18] sm:$0xf]
      %v1048 = vsel %vm412, %v993, %v1047
      %1049 = vst [vmem:[#allocation2 + $0x18] sm:$0xf] %v1048
      %1050 = vst [vmem:[#allocation2 + $0x24] sm:$0xf] %v1002
      %v1051 = vld [vmem:[#allocation2 + $0x30] sm:$0xf]
      %v1052 = vsel %vm412, %v1009, %v1051
      %1053 = vst [vmem:[#allocation2 + $0x30] sm:$0xf] %v1052
      %1054 = vst [vmem:[#allocation2 + $0x3c] sm:$0xf] %v1018
      %v1055 = vld [vmem:[#allocation2 + $0x48] sm:$0xf]
      %v1056 = vsel %vm412, %v1025, %v1055
      %1057 = vst [vmem:[#allocation2 + $0x48] sm:$0xf] %v1056
      %1058 = vst [vmem:[#allocation2 + $0x54] sm:$0xf] %v1034
      %1067 = vst [vmem:[#allocation2 + $0x4] sm:$0xf] %v963
      %1068 = vst [vmem:[#allocation2 + $0x10] sm:$0xf] %v964
      %1069 = vst [vmem:[#allocation2 + $0x1c] sm:$0xf] %v965
      %1070 = vst [vmem:[#allocation2 + $0x28] sm:$0xf] %v966
      %1071 = vst [vmem:[#allocation2 + $0x34] sm:$0xf] %v967
      %1072 = vst [vmem:[#allocation2 + $0x40] sm:$0xf] %v968
      %1073 = vst [vmem:[#allocation2 + $0x4c] sm:$0xf] %v969
      %1074 = vst [vmem:[#allocation2 + $0x58] sm:$0xf] %v970
      %v1075 = vrot.slane %v972, 4
      %v1076 = vrot.slane %v975, 5
      %v1077 = vor.u32 %v1075, %v1076
      %v1078 = vrot.slane %v1077, 4
      %v1079 = vrot.slane %v983, 5
      %v1080 = vsel %vm447, %v1078, %v1079
      %v1081 = vrot.slane %v980, 4
      %v1082 = vor.u32 %v1081, %v1079
      %v1083 = vrot.slane %v1082, 4
      %v1084 = vrot.slane %v988, 4
      %v1085 = vrot.slane %v991, 5
      %v1086 = vor.u32 %v1084, %v1085
      %v1087 = vrot.slane %v1086, 4
      %v1088 = vrot.slane %v999, 5
      %v1089 = vsel %vm447, %v1087, %v1088
      %v1090 = vrot.slane %v996, 4
      %v1091 = vor.u32 %v1090, %v1088
      %v1092 = vrot.slane %v1091, 4
      %v1093 = vrot.slane %v1004, 4
      %v1094 = vrot.slane %v1007, 5
      %v1095 = vor.u32 %v1093, %v1094
      %v1096 = vrot.slane %v1095, 4
      %v1097 = vrot.slane %v1015, 5
      %v1098 = vsel %vm447, %v1096, %v1097
      %v1099 = vrot.slane %v1012, 4
      %v1100 = vor.u32 %v1099, %v1097
      %v1101 = vrot.slane %v1100, 4
      %v1102 = vrot.slane %v1020, 4
      %v1103 = vrot.slane %v1023, 5
      %v1104 = vor.u32 %v1102, %v1103
      %v1105 = vrot.slane %v1104, 4
      %v1106 = vrot.slane %v1031, 5
      %v1107 = vsel %vm447, %v1105, %v1106
      %v1108 = vrot.slane %v1028, 4
      %v1109 = vor.u32 %v1108, %v1106
      %v1110 = vrot.slane %v1109, 4
      %1119 = vst [vmem:[#allocation2 + $0x8] sm:$0xf] %v1080
      %v1120 = vld [vmem:[#allocation2 + $0x14] sm:$0xf]
      %v1121 = vsel %vm493, %v1083, %v1120
      %1122 = vst [vmem:[#allocation2 + $0x14] sm:$0xf] %v1121
      %1123 = vst [vmem:[#allocation2 + $0x20] sm:$0xf] %v1089
      %v1124 = vld [vmem:[#allocation2 + $0x2c] sm:$0xf]
      %v1125 = vsel %vm493, %v1092, %v1124
      %1126 = vst [vmem:[#allocation2 + $0x2c] sm:$0xf] %v1125
      %1127 = vst [vmem:[#allocation2 + $0x38] sm:$0xf] %v1098
      %v1128 = vld [vmem:[#allocation2 + $0x44] sm:$0xf]
      %v1129 = vsel %vm493, %v1101, %v1128
      %1130 = vst [vmem:[#allocation2 + $0x44] sm:$0xf] %v1129
      %1131 = vst [vmem:[#allocation2 + $0x50] sm:$0xf] %v1107
      %v1132 = vld [vmem:[#allocation2 + $0x5c] sm:$0xf]
      %v1133 = vsel %vm493, %v1110, %v1132
      %1134 = vst [vmem:[#allocation2 + $0x5c] sm:$0xf] %v1133
      %v1135 = vld [vmem:[#allocation2] sm:$0xff]
      %v1136 = vld [vmem:[#allocation2 + $0x8] sm:$0xf]
      %v1137 = vld [vmem:[#allocation2 + $0xc] sm:$0xff]
      %v1138 = vld [vmem:[#allocation2 + $0x14] sm:$0xf]
      %v1139 = vld [vmem:[#allocation2 + $0x18] sm:$0xff]
      %v1140 = vld [vmem:[#allocation2 + $0x20] sm:$0xf]
      %v1141 = vld [vmem:[#allocation2 + $0x24] sm:$0xff]
      %v1142 = vld [vmem:[#allocation2 + $0x2c] sm:$0xf]
      %v1143 = vld [vmem:[#allocation2 + $0x30] sm:$0xff]
      %v1144 = vld [vmem:[#allocation2 + $0x38] sm:$0xf]
      %v1145 = vld [vmem:[#allocation2 + $0x3c] sm:$0xff]
      %v1146 = vld [vmem:[#allocation2 + $0x44] sm:$0xf]
      %v1147 = vld [vmem:[#allocation2 + $0x48] sm:$0xff]
      %v1148 = vld [vmem:[#allocation2 + $0x50] sm:$0xf]
      %v1149 = vld [vmem:[#allocation2 + $0x54] sm:$0xff]
      %v1150 = vld [vmem:[#allocation2 + $0x5c] sm:$0xf]
      %v1151 = vld [vmem:[%s4] sm:$0xf]
      %v1152 = vld [vmem:[%s4 + $0x4] sm:$0xf]
      %v1153 = vld [vmem:[%s4 + $0x8] sm:$0xf]
      %v1154 = vld [vmem:[%s4 + $0xc] sm:$0xf]
      %v1155 = vld [vmem:[%s4 + $0x10] sm:$0xf]
      %v1156 = vld [vmem:[%s4 + $0x14] sm:$0xf]
      %v1157 = vld [vmem:[%s4 + $0x18] sm:$0xf]
      %v1158 = vld [vmem:[%s4 + $0x1c] sm:$0xf]
      %v1159 = vld [vmem:[%s4 + $0x20] sm:$0xf]
      %v1160 = vld [vmem:[%s4 + $0x24] sm:$0xf]
      %v1161 = vld [vmem:[%s4 + $0x28] sm:$0xf]
      %v1162 = vld [vmem:[%s4 + $0x2c] sm:$0xf]
      %v1163 = vld [vmem:[%s4 + $0x30] sm:$0xf]
      %v1164 = vld [vmem:[%s4 + $0x34] sm:$0xf]
      %v1165 = vld [vmem:[%s4 + $0x38] sm:$0xf]
      %v1166 = vld [vmem:[%s4 + $0x3c] sm:$0xf]
      %v1167 = vld [vmem:[%s4 + $0x40] sm:$0xf]
      %v1168 = vld [vmem:[%s4 + $0x44] sm:$0xf]
      %v1169 = vld [vmem:[%s4 + $0x48] sm:$0xf]
      %v1170 = vld [vmem:[%s4 + $0x4c] sm:$0xf]
      %v1171 = vld [vmem:[%s4 + $0x50] sm:$0xf]
      %v1172 = vld [vmem:[%s4 + $0x54] sm:$0xf]
      %v1173 = vld [vmem:[%s4 + $0x58] sm:$0xf]
      %v1174 = vld [vmem:[%s4 + $0x5c] sm:$0xf]
      %v1175 = vld [vmem:[%s4 + $0x60] sm:$0xf]
      %v1176 = vld [vmem:[%s4 + $0x64] sm:$0xf]
      %v1177 = vld [vmem:[%s4 + $0x68] sm:$0xf]
      %v1178 = vld [vmem:[%s4 + $0x6c] sm:$0xf]
      %v1179 = vld [vmem:[%s4 + $0x70] sm:$0xf]
      %v1180 = vld [vmem:[%s4 + $0x74] sm:$0xf]
      %v1181 = vld [vmem:[%s4 + $0x78] sm:$0xf]
      %v1182 = vld [vmem:[%s4 + $0x7c] sm:$0xf]
      %v1183 = vld [vmem:[%s4 + $0x80] sm:$0xf]
      %v1184 = vld [vmem:[%s4 + $0x84] sm:$0xf]
      %v1185 = vld [vmem:[%s4 + $0x88] sm:$0xf]
      %v1186 = vld [vmem:[%s4 + $0x8c] sm:$0xf]
      %v1187 = vld [vmem:[%s4 + $0x90] sm:$0xf]
      %v1188 = vld [vmem:[%s4 + $0x94] sm:$0xf]
      %v1189 = vld [vmem:[%s4 + $0x98] sm:$0xf]
      %v1190 = vld [vmem:[%s4 + $0x9c] sm:$0xf]
      %v1191 = vld [vmem:[%s4 + $0xa0] sm:$0xf]
      %v1192 = vld [vmem:[%s4 + $0xa4] sm:$0xf]
      %v1193 = vld [vmem:[%s4 + $0xa8] sm:$0xf]
      %v1194 = vld [vmem:[%s4 + $0xac] sm:$0xf]
      %v1195 = vld [vmem:[%s4 + $0xb0] sm:$0xf]
      %v1196 = vld [vmem:[%s4 + $0xb4] sm:$0xf]
      %v1197 = vld [vmem:[%s4 + $0xb8] sm:$0xf]
      %v1198 = vld [vmem:[%s4 + $0xbc] sm:$0xf]
      %v1215 = vunpack.c.l.b16 %v1135
      %v1216 = vunpack.c.h.b16 %v1135
      %v1217 = vunpack.c.l.b16 %v1136
      %v1218 = vunpack.c.l.b16 %v1137
      %v1219 = vunpack.c.h.b16 %v1137
      %v1220 = vunpack.c.l.b16 %v1138
      %v1221 = vunpack.c.l.b16 %v1139
      %v1222 = vunpack.c.h.b16 %v1139
      %v1223 = vunpack.c.l.b16 %v1140
      %v1224 = vunpack.c.l.b16 %v1141
      %v1225 = vunpack.c.h.b16 %v1141
      %v1226 = vunpack.c.l.b16 %v1142
      %v1227 = vunpack.c.l.b16 %v1143
      %v1228 = vunpack.c.h.b16 %v1143
      %v1229 = vunpack.c.l.b16 %v1144
      %v1230 = vunpack.c.l.b16 %v1145
      %v1231 = vunpack.c.h.b16 %v1145
      %v1232 = vunpack.c.l.b16 %v1146
      %v1233 = vunpack.c.l.b16 %v1147
      %v1234 = vunpack.c.h.b16 %v1147
      %v1235 = vunpack.c.l.b16 %v1148
      %v1236 = vunpack.c.l.b16 %v1149
      %v1237 = vunpack.c.h.b16 %v1149
      %v1238 = vunpack.c.l.b16 %v1150
      %v1239 = vpack.c.b16 %v1218, %v1215
      %v1240 = vpack.c.b16 %v1219, %v1216
      %v1241 = vpack.c.b16 %v1220, %v1217
      %v1242 = vpack.c.b16 %v1224, %v1221
      %v1243 = vpack.c.b16 %v1225, %v1222
      %v1244 = vpack.c.b16 %v1226, %v1223
      %v1245 = vpack.c.b16 %v1230, %v1227
      %v1246 = vpack.c.b16 %v1231, %v1228
      %v1247 = vpack.c.b16 %v1232, %v1229
      %v1248 = vpack.c.b16 %v1236, %v1233
      %v1249 = vpack.c.b16 %v1237, %v1234
      %v1250 = vpack.c.b16 %v1238, %v1235
      %v1311 = vunpack.c.l.b16 %v1151
      %v1312 = vunpack.c.l.b16 %v1152
      %v1313 = vunpack.c.l.b16 %v1153
      %v1314 = vunpack.c.l.b16 %v1154
      %v1315 = vunpack.c.l.b16 %v1155
      %v1316 = vunpack.c.l.b16 %v1156
      %v1317 = vunpack.c.l.b16 %v1157
      %v1318 = vunpack.c.l.b16 %v1158
      %v1319 = vunpack.c.l.b16 %v1159
      %v1320 = vunpack.c.l.b16 %v1160
      %v1321 = vunpack.c.l.b16 %v1161
      %v1322 = vunpack.c.l.b16 %v1162
      %v1323 = vunpack.c.l.b16 %v1163
      %v1324 = vunpack.c.l.b16 %v1164
      %v1325 = vunpack.c.l.b16 %v1165
      %v1326 = vunpack.c.l.b16 %v1166
      %v1327 = vunpack.c.l.b16 %v1167
      %v1328 = vunpack.c.l.b16 %v1168
      %v1329 = vunpack.c.l.b16 %v1169
      %v1330 = vunpack.c.l.b16 %v1170
      %v1331 = vunpack.c.l.b16 %v1171
      %v1332 = vunpack.c.l.b16 %v1172
      %v1333 = vunpack.c.l.b16 %v1173
      %v1334 = vunpack.c.l.b16 %v1174
      %v1335 = vunpack.c.l.b16 %v1175
      %v1336 = vunpack.c.l.b16 %v1176
      %v1337 = vunpack.c.l.b16 %v1177
      %v1338 = vunpack.c.l.b16 %v1178
      %v1339 = vunpack.c.l.b16 %v1179
      %v1340 = vunpack.c.l.b16 %v1180
      %v1341 = vunpack.c.l.b16 %v1181
      %v1342 = vunpack.c.l.b16 %v1182
      %v1343 = vunpack.c.l.b16 %v1183
      %v1344 = vunpack.c.l.b16 %v1184
      %v1345 = vunpack.c.l.b16 %v1185
      %v1346 = vunpack.c.l.b16 %v1186
      %v1347 = vunpack.c.l.b16 %v1187
      %v1348 = vunpack.c.l.b16 %v1188
      %v1349 = vunpack.c.l.b16 %v1189
      %v1350 = vunpack.c.l.b16 %v1190
      %v1351 = vunpack.c.l.b16 %v1191
      %v1352 = vunpack.c.l.b16 %v1192
      %v1353 = vunpack.c.l.b16 %v1193
      %v1354 = vunpack.c.l.b16 %v1194
      %v1355 = vunpack.c.l.b16 %v1195
      %v1356 = vunpack.c.l.b16 %v1196
      %v1357 = vunpack.c.l.b16 %v1197
      %v1358 = vunpack.c.l.b16 %v1198
      %v1359 = vpack.c.b16 %v1312, %v1311
      %v1360 = vpack.c.b16 %v1314, %v1313
      %v1361 = vpack.c.b16 %v1316, %v1315
      %v1362 = vpack.c.b16 %v1318, %v1317
      %v1363 = vpack.c.b16 %v1320, %v1319
      %v1364 = vpack.c.b16 %v1322, %v1321
      %v1365 = vpack.c.b16 %v1324, %v1323
      %v1366 = vpack.c.b16 %v1326, %v1325
      %v1367 = vpack.c.b16 %v1328, %v1327
      %v1368 = vpack.c.b16 %v1330, %v1329
      %v1369 = vpack.c.b16 %v1332, %v1331
      %v1370 = vpack.c.b16 %v1334, %v1333
      %v1371 = vpack.c.b16 %v1336, %v1335
      %v1372 = vpack.c.b16 %v1338, %v1337
      %v1373 = vpack.c.b16 %v1340, %v1339
      %v1374 = vpack.c.b16 %v1342, %v1341
      %v1375 = vpack.c.b16 %v1344, %v1343
      %v1376 = vpack.c.b16 %v1346, %v1345
      %v1377 = vpack.c.b16 %v1348, %v1347
      %v1378 = vpack.c.b16 %v1350, %v1349
      %v1379 = vpack.c.b16 %v1352, %v1351
      %v1380 = vpack.c.b16 %v1354, %v1353
      %v1381 = vpack.c.b16 %v1356, %v1355
      %v1382 = vpack.c.b16 %v1358, %v1357
      %1407 = vmatprep.subr.bf16.mxu0 0
      %1408 = vmatpush1.bf16.msra.mxu0 %v1366
      %1409 = vmatprep.subr.bf16.mxu0 0
      %1410 = vmatpush1.bf16.msra.mxu0 %v1365
      %1411 = vmatprep.subr.bf16.mxu0 0
      %1412 = vmatpush1.bf16.msra.mxu0 %v1364
      %1413 = vmatprep.subr.bf16.mxu0 0
      %1414 = vmatpush1.bf16.msra.mxu0 %v1363
      %1415 = vmatprep.subr.bf16.mxu0 0
      %1416 = vmatpush1.bf16.msra.mxu0 %v1362
      %1417 = vmatprep.subr.bf16.mxu0 0
      %1418 = vmatpush1.bf16.msra.mxu0 %v1361
      %1419 = vmatprep.subr.bf16.mxu0 0
      %1420 = vmatpush1.bf16.msra.mxu0 %v1360
      %1421 = vmatprep.subr.bf16.mxu0 0
      %1422 = vmatpush1.bf16.msra.mxu0 %v1359
      %1423 = vmatprep.subr.bf16.mxu0 0
      %1424 = vmatpush2.bf16.msra.mxu0 %v1374
      %1425 = vmatprep.subr.bf16.mxu0 0
      %1426 = vmatpush2.bf16.msra.mxu0 %v1373
      %1427 = vmatprep.subr.bf16.mxu0 0
      %1428 = vmatpush2.bf16.msra.mxu0 %v1372
      %1429 = vmatprep.subr.bf16.mxu0 0
      %1430 = vmatpush2.bf16.msra.mxu0 %v1371
      %1431 = vmatprep.subr.bf16.mxu0 0
      %1432 = vmatpush2.bf16.msra.mxu0 %v1370
      %1433 = vmatprep.subr.bf16.mxu0 0
      %1434 = vmatpush2.bf16.msra.mxu0 %v1369
      %1435 = vmatprep.subr.bf16.mxu0 0
      %1436 = vmatpush2.bf16.msra.mxu0 %v1368
      %1437 = vmatprep.subr.bf16.mxu0 0
      %1438 = vmatpush2.bf16.msra.mxu0 %v1367
      %1439 = vmatprep.mubr.bf16.mxu0 %v1240
      %1440 = vmatmul.mubr.bf16.gmra.mxu0 %v1239
      %v1441 = vpop.f32.mrf.mxu0
      %v1442 = vadd.f32 0.0, %v1441
      %v1443 = vpop.f32.mrf.mxu0
      %v1444 = vpop.f32.mrf.mxu0
      %v1445 = vadd.f32 0.0, %v1444
      %v1446 = vpop.f32.mrf.mxu0
      %1447 = vmatprep.mubr.bf16.mxu0 %v1243
      %1448 = vmatmul.mubr.bf16.gmra.mxu0 %v1242
      %v1449 = vpop.f32.mrf.mxu0
      %v1450 = vadd.f32 0.0, %v1449
      %v1451 = vpop.f32.mrf.mxu0
      %v1452 = vpop.f32.mrf.mxu0
      %v1453 = vadd.f32 0.0, %v1452
      %v1454 = vpop.f32.mrf.mxu0
      %1455 = vmatprep.mubr.bf16.mxu0 %v1246
      %1456 = vmatmul.mubr.bf16.gmra.mxu0 %v1245
      %v1457 = vpop.f32.mrf.mxu0
      %v1458 = vadd.f32 0.0, %v1457
      %v1459 = vpop.f32.mrf.mxu0
      %v1460 = vpop.f32.mrf.mxu0
      %v1461 = vadd.f32 0.0, %v1460
      %v1462 = vpop.f32.mrf.mxu0
      %1463 = vmatprep.mubr.bf16.mxu0 %v1249
      %1464 = vmatmul.mubr.bf16.gmra.mxu0 %v1248
      %v1465 = vpop.f32.mrf.mxu0
      %v1466 = vadd.f32 0.0, %v1465
      %v1467 = vpop.f32.mrf.mxu0
      %v1468 = vpop.f32.mrf.mxu0
      %v1469 = vadd.f32 0.0, %v1468
      %v1470 = vpop.f32.mrf.mxu0
      %1471 = vdwg.mxu0
      %1472 = vmatprep.subr.bf16.mxu0 0
      %1473 = vmatpush1.bf16.msra.mxu0 %v1382
      %1474 = vmatprep.subr.bf16.mxu0 0
      %1475 = vmatpush1.bf16.msra.mxu0 %v1381
      %1476 = vmatprep.subr.bf16.mxu0 0
      %1477 = vmatpush1.bf16.msra.mxu0 %v1380
      %1478 = vmatprep.subr.bf16.mxu0 0
      %1479 = vmatpush1.bf16.msra.mxu0 %v1379
      %1480 = vmatprep.subr.bf16.mxu0 0
      %1481 = vmatpush1.bf16.msra.mxu0 %v1378
      %1482 = vmatprep.subr.bf16.mxu0 0
      %1483 = vmatpush1.bf16.msra.mxu0 %v1377
      %1484 = vmatprep.subr.bf16.mxu0 0
      %1485 = vmatpush1.bf16.msra.mxu0 %v1376
      %1486 = vmatprep.subr.bf16.mxu0 0
      %1487 = vmatpush1.bf16.msra.mxu0 %v1375
      %1488 = vmatprep.subr.bf16.mxu0 0
      %1489 = vmatpush2.bf16.msra.mxu0 0
      %1490 = vmatprep.subr.bf16.mxu0 0
      %1491 = vmatpush2.bf16.msra.mxu0 0
      %1492 = vmatprep.subr.bf16.mxu0 0
      %1493 = vmatpush2.bf16.msra.mxu0 0
      %1494 = vmatprep.subr.bf16.mxu0 0
      %1495 = vmatpush2.bf16.msra.mxu0 0
      %1496 = vmatprep.subr.bf16.mxu0 0
      %1497 = vmatpush2.bf16.msra.mxu0 0
      %1498 = vmatprep.subr.bf16.mxu0 0
      %1499 = vmatpush2.bf16.msra.mxu0 0
      %1500 = vmatprep.subr.bf16.mxu0 0
      %1501 = vmatpush2.bf16.msra.mxu0 0
      %1502 = vmatprep.subr.bf16.mxu0 0
      %1503 = vmatpush2.bf16.msra.mxu0 0
      %1504 = vmatprep.mubr.bf16.mxu0 0
      %1505 = vmatmul.mubr.bf16.gmra.mxu0 %v1241
      %v1506 = vpop.f32.mrf.mxu0
      %v1507 = vadd.f32 %v1442, %v1506
      %v1508 = vpop.f32.mrf.mxu0
      %v1509 = vpop.f32.mrf.mxu0
      %v1510 = vadd.f32 %v1445, %v1509
      %v1511 = vpop.f32.mrf.mxu0
      %1512 = vmatprep.mubr.bf16.mxu0 0
      %1513 = vmatmul.mubr.bf16.gmra.mxu0 %v1244
      %v1514 = vpop.f32.mrf.mxu0
      %v1515 = vadd.f32 %v1450, %v1514
      %v1516 = vpop.f32.mrf.mxu0
      %v1517 = vpop.f32.mrf.mxu0
      %v1518 = vadd.f32 %v1453, %v1517
      %v1519 = vpop.f32.mrf.mxu0
      %1520 = vmatprep.mubr.bf16.mxu0 0
      %1521 = vmatmul.mubr.bf16.gmra.mxu0 %v1247
      %v1522 = vpop.f32.mrf.mxu0
      %v1523 = vadd.f32 %v1458, %v1522
      %v1524 = vpop.f32.mrf.mxu0
      %v1525 = vpop.f32.mrf.mxu0
      %v1526 = vadd.f32 %v1461, %v1525
      %v1527 = vpop.f32.mrf.mxu0
      %1528 = vmatprep.mubr.bf16.mxu0 0
      %1529 = vmatmul.mubr.bf16.gmra.mxu0 %v1250
      %v1530 = vpop.f32.mrf.mxu0
      %v1531 = vadd.f32 %v1466, %v1530
      %v1532 = vpop.f32.mrf.mxu0
      %v1533 = vpop.f32.mrf.mxu0
      %v1534 = vadd.f32 %v1469, %v1533
      %v1535 = vpop.f32.mrf.mxu0
      %1536 = vdwg.mxu0
      %v1537 = vadd.f32 %v1507, %v1510
      %v1538 = vadd.f32 %v1537, %v1515
      %v1539 = vadd.f32 %v1538, %v1518
      %v1540 = vadd.f32 %v1539, %v1523
      %v1541 = vadd.f32 %v1540, %v1526
      %v1542 = vadd.f32 %v1541, %v1531
      %v1543 = vadd.f32 %v1542, %v1534
      %v1544 = vrot.slane %v1543, 4
      %v1545 = vadd.f32 %v1543, %v1544
      %v1546 = vrot.slane %v1545, 2
      %v1547 = vadd.f32 %v1545, %v1546
      %v1548 = vrot.slane %v1547, 1
      %v1549 = vadd.f32 %v1547, %v1548
      %v1550 = vadd.f32 %v1549, 0.0
      %v1551 = vmul.f32 %v1507, %v1507
      %v1552 = vmul.f32 %v1510, %v1510
      %v1553 = vmul.f32 %v1515, %v1515
      %v1554 = vmul.f32 %v1518, %v1518
      %v1555 = vmul.f32 %v1523, %v1523
      %v1556 = vmul.f32 %v1526, %v1526
      %v1557 = vmul.f32 %v1531, %v1531
      %v1558 = vmul.f32 %v1534, %v1534
      %v1559 = vadd.f32 %v1551, %v1552
      %v1560 = vadd.f32 %v1559, %v1553
      %v1561 = vadd.f32 %v1560, %v1554
      %v1562 = vadd.f32 %v1561, %v1555
      %v1563 = vadd.f32 %v1562, %v1556
      %v1564 = vadd.f32 %v1563, %v1557
      %v1565 = vadd.f32 %v1564, %v1558
      %v1566 = vrot.slane %v1565, 4
      %v1567 = vadd.f32 %v1565, %v1566
      %v1568 = vrot.slane %v1567, 2
      %v1569 = vadd.f32 %v1567, %v1568
      %v1570 = vrot.slane %v1569, 1
      %v1571 = vadd.f32 %v1569, %v1570
      %v1572 = vadd.f32 %v1571, 0.0
      %v1573 = vpack.c.bf16 %v1510, %v1507
      %v1574 = vpack.c.bf16 %v1518, %v1515
      %v1575 = vpack.c.bf16 %v1526, %v1523
      %v1576 = vpack.c.bf16 %v1534, %v1531
      %v1581 = vunpack.c.l.b16 %v1573
      %v1582 = vunpack.c.h.b16 %v1573
      %v1583 = vunpack.c.l.b16 %v1574
      %v1584 = vunpack.c.h.b16 %v1574
      %v1585 = vunpack.c.l.b16 %v1575
      %v1586 = vunpack.c.h.b16 %v1575
      %v1587 = vunpack.c.l.b16 %v1576
      %v1588 = vunpack.c.h.b16 %v1576
      %v1589 = vpack.c.b16 %v1581, %v1581
      %v1590 = vpack.c.b16 %v1582, %v1582
      %v1591 = vpack.c.b16 %v1583, %v1583
      %v1592 = vpack.c.b16 %v1584, %v1584
      %v1593 = vpack.c.b16 %v1585, %v1585
      %v1594 = vpack.c.b16 %v1586, %v1586
      %v1595 = vpack.c.b16 %v1587, %v1587
      %v1596 = vpack.c.b16 %v1588, %v1588
      %1605 = vst [vmem:[%s265] sm:$0xf] %v1589
      %1606 = vst [vmem:[%s265 + $0x4] sm:$0xf] %v1590
      %1607 = vst [vmem:[%s265 + $0x8] sm:$0xf] %v1591
      %1608 = vst [vmem:[%s265 + $0xc] sm:$0xf] %v1592
      %1609 = vst [vmem:[%s265 + $0x10] sm:$0xf] %v1593
      %1610 = vst [vmem:[%s265 + $0x14] sm:$0xf] %v1594
      %1611 = vst [vmem:[%s265 + $0x18] sm:$0xf] %v1595
      %1612 = vst [vmem:[%s265 + $0x1c] sm:$0xf] %v1596
      %vm1613 = vcmask 1040384
      %v1614 = vsel %vm1613, %v1550, %v1572
      %1615 = vst [vmem:[%s270] sm:$0x3] %v1614
      %s1616 = smul.u32 4, %s18
      %p1617 = scmp.lt.s32.totalorder %s1616, 7
      %s1618 = scalar_select %p1617, %s1616, 7
      %s1619 = smul.addr %s1618, 2
      %s1620 = smul.addr %s1619, 4
      %s1621 = scalar_lea.vmem %s5, %s1620
      %p1622 = scmp.lt.s32.totalorder %s18, 1
      %s1623 = scalar_select %p1622, %s18, 1
      %s1624 = smul.addr %s1623, 2
      %s1625 = scalar_lea.vmem %s6, %s1624
      // Predicated region
      $region41: #{basic_block1.4} parent=39 // pred_check
        %p1626 = pneg %p146
      $region42: #{basic_block1.4} parent=39 // pred_check_branch
        %1628 = sbr.rel (%p1626) target = $region44
      $region43: #{basic_block1.4} parent=39 // pred_region
        %s1629 = smul.u32 4, %s18
      $region44: #{basic_block1.4} parent=39 // pred_fallthru
        _
      // Predicated region
      $region45: #{basic_block1.4} parent=39 // pred_check
        %p1630 = pneg %p172
      $region46: #{basic_block1.4} parent=39 // pred_check_branch
        %1632 = sbr.rel (%p1630) target = $region48
      $region47: #{basic_block1.4} parent=39 // pred_region
        _
      $region48: #{basic_block1.4} parent=39 // pred_fallthru
        _
    $region40: #{basic_block1.4} parent=5 // pred_fallthru
      _
    %p1633 = scmp.le.s32.totalorder 2, %s13
    // Predicated region
    $region49: #{basic_block1.4} parent=5 // pred_check
      %p1634 = pneg %p1633
    $region50: #{basic_block1.4} parent=5 // pred_check_branch
      %1636 = sbr.rel (%p1634) target = $region52
    $region51: #{basic_block1.4} parent=5 // pred_region
      %s1637 = ssub.s32 %s13, 2
      // Predicated region
      $region53: #{basic_block1.4} parent=51 // pred_check
        %p1638 = pneg %p152
      $region54: #{basic_block1.4} parent=51 // pred_check_branch
        %1640 = sbr.rel (%p1638) target = $region56
      $region55: #{basic_block1.4} parent=51 // pred_region
        %s1641 = smul.u32 4, %s19
        %p1642 = scmp.lt.s32.totalorder %s1641, 7
        %s1643 = scalar_select %p1642, %s1641, 7
        %s1644 = smul.addr %s1643, 2
        %s1645 = smul.addr %s1644, 4
        %s1646 = scalar_lea.vmem %s5, %s1645
      $region56: #{basic_block1.4} parent=51 // pred_fallthru
        _
      // Predicated region
      $region57: #{basic_block1.4} parent=51 // pred_check
        %p1647 = pneg %p178
      $region58: #{basic_block1.4} parent=51 // pred_check_branch
        %1649 = sbr.rel (%p1647) target = $region60
      $region59: #{basic_block1.4} parent=51 // pred_region
        %p1650 = scmp.lt.s32.totalorder %s19, 1
        %s1651 = scalar_select %p1650, %s19, 1
        %s1652 = smul.addr %s1651, 2
        %s1653 = scalar_lea.vmem %s6, %s1652
      $region60: #{basic_block1.4} parent=51 // pred_fallthru
        _
    $region52: #{basic_block1.4} parent=5 // pred_fallthru
      _
  $region6: #{basic_block1.4} parent=0 // loop_footer
    %s17 = sadd.s32 1, %s13
  $region7: #{basic_block1.4} parent=0 // loop_footer_branch
    %12 = sbr.rel target = $region3
  $region8: #{basic_block1.4} parent=0 // loop_exit
    _

</llo_original>
